<compile_context>
chip_gen: v7x
topology: tpu7x:2x2x1
jax: 0.10.0
libtpu: 0.0.40
codegen_flags: <defaults>
</compile_context>

<pallas_src>
import functools

import jax
import jax.numpy as jnp
from jax import lax
from jax.experimental import pallas as pl
from jax.experimental.pallas import tpu as pltpu


def _block_kernel(x_ref, dww_ref, dwb_ref, lng_ref, lnb_ref,
                  w1_ref, b1_ref, w2_ref, b2_ref, gamma_ref,
                  out_ref, xpad_ref, *, H, W, C, TH, eps):
    # x_ref   : (1, H, W, C)      full image of current batch element (VMEM)
    # out_ref : (1, TH*W, C)      flattened output tile
    # xpad_ref: (H+6, W+6, C) f32 zero-padded image (VMEM scratch, built at i==0)
    i = pl.program_id(1)

    # ---- build zero-padded image in VMEM once per batch element ----
    @pl.when(i == 0)
    def _():
        xpad_ref[...] = jnp.zeros_like(xpad_ref)
        xpad_ref[3:3 + H, 3:3 + W, :] = x_ref[0].astype(jnp.float32)

    row0 = pl.multiple_of(i * TH, TH)   # first padded row of this tile's window

    # ---- depthwise 7x7 conv for this row tile (VPU, f32) ----
    def kh_body(kh, acc):
        rows = xpad_ref[pl.ds(row0 + kh, TH), :, :]        # (TH, W+6, C)
        wrow = dww_ref[kh].astype(jnp.float32)             # (7, C)
        for kw in range(7):                                # static unroll
            acc = acc + rows[:, kw:kw + W, :] * wrow[kw, :]
        return acc

    acc = lax.fori_loop(0, 7, kh_body, jnp.zeros((TH, W, C), jnp.float32))
    acc = acc + dwb_ref[0].astype(jnp.float32)

    # flatten spatial dims once and keep (M, C) through to the store
    M = TH * W
    acc = acc.reshape(M, C)

    # ---- LayerNorm over channels (eps=1e-6) ----
    mean = jnp.mean(acc, axis=-1, keepdims=True)
    xc = acc - mean
    var = jnp.mean(xc * xc, axis=-1, keepdims=True)
    xn = xc * lax.rsqrt(var + eps)
    xn = xn * lng_ref[0].astype(jnp.float32) + lnb_ref[0].astype(jnp.float32)

    # ---- pointwise MLP: bf16 operands, f32 accumulation on the MXU ----
    h = jnp.dot(xn.astype(jnp.bfloat16), w1_ref[...],
                preferred_element_type=jnp.float32) + b1_ref[0].astype(jnp.float32)
    # exact GELU (PyTorch nn.GELU default)
    h = 0.5 * h * (1.0 + lax.erf(h * jnp.float32(0.7071067811865476)))
    y = jnp.dot(h.astype(jnp.bfloat16), w2_ref[...],
                preferred_element_type=jnp.float32) + b2_ref[0].astype(jnp.float32)

    # ---- layer scale + residual (residual read from padded-slab interior) ----
    y = y * gamma_ref[0].astype(jnp.float32)
    res = xpad_ref[pl.ds(row0 + 3, TH), 3:3 + W, :].reshape(M, C)
    out_ref[0] = (res + y).astype(out_ref.dtype)


def convnext_block(x_nchw, params, *, tile_h=8, eps=1e-6):
    """x_nchw: (B, C, H, W) float32. Returns (B, C, H, W)."""
    B, C, H, W = x_nchw.shape
    hidden = params["w1"].shape[1]

    TH = max(1, min(tile_h, H))
    while H % TH:          # pick a tile height that divides H
        TH -= 1
    nH = H // TH
    M = TH * W
    assert (M % 8 == 0) or nH == 1, "tile rows * W must be a multiple of 8"

    x_nhwc = jnp.transpose(x_nchw, (0, 2, 3, 1))            # (B, H, W, C)

    kernel = functools.partial(_block_kernel, H=H, W=W, C=C, TH=TH, eps=eps)

    out_flat = pl.pallas_call(
        kernel,
        out_shape=jax.ShapeDtypeStruct((B, H * W, C), x_nchw.dtype),
        grid_spec=pltpu.PrefetchScalarGridSpec(
            num_scalar_prefetch=0,
            grid=(B, nH),
            in_specs=[
                pl.BlockSpec((1, H, W, C), lambda b, i: (b, 0, 0, 0)),  # image (fetched once per b)
                pl.BlockSpec((7, 7, C), lambda b, i: (0, 0, 0)),        # dw weight
                pl.BlockSpec((1, C), lambda b, i: (0, 0)),              # dw bias
                pl.BlockSpec((1, C), lambda b, i: (0, 0)),              # ln weight
                pl.BlockSpec((1, C), lambda b, i: (0, 0)),              # ln bias
                pl.BlockSpec((C, hidden), lambda b, i: (0, 0)),         # w1 (bf16)
                pl.BlockSpec((1, hidden), lambda b, i: (0, 0)),         # b1
                pl.BlockSpec((hidden, C), lambda b, i: (0, 0)),         # w2 (bf16)
                pl.BlockSpec((1, C), lambda b, i: (0, 0)),              # b2
                pl.BlockSpec((1, C), lambda b, i: (0, 0)),              # gamma
            ],
            out_specs=pl.BlockSpec((1, M, C), lambda b, i: (b, i, 0)),
            scratch_shapes=[pltpu.VMEM((H + 6, W + 6, C), jnp.float32)],
        ),
        compiler_params=pltpu.CompilerParams(
            dimension_semantics=("parallel", "arbitrary"),
            vmem_limit_bytes=64 * 1024 * 1024,
        ),
    )(x_nhwc,
      params["dw_w"], params["dw_b"],
      params["ln_w"], params["ln_b"],
      params["w1"].astype(jnp.bfloat16), params["b1"],
      params["w2"].astype(jnp.bfloat16), params["b2"],
      params["gamma"])

    out_nhwc = out_flat.reshape(B, H, W, C)
    return jnp.transpose(out_nhwc, (0, 3, 1, 2))             # back to NCHW


def init_params(key, dim, init_value=1e-6):
    hidden = 4 * dim
    k = jax.random.split(key, 6)
    return {
        # depthwise conv: PyTorch weight (dim,1,7,7) stored here as (7,7,dim)
        "dw_w": 0.05 * jax.random.normal(k[0], (7, 7, dim), jnp.float32),
        "dw_b": 0.05 * jax.random.normal(k[1], (1, dim), jnp.float32),
        "ln_w": jnp.ones((1, dim), jnp.float32),
        "ln_b": jnp.zeros((1, dim), jnp.float32),
        # Linear weights stored (in, out) = PyTorch weight.T, kept in bf16
        "w1": (0.05 * jax.random.normal(k[2], (dim, hidden), jnp.float32)
               ).astype(jnp.bfloat16),
        "b1": 0.05 * jax.random.normal(k[3], (1, hidden), jnp.float32),
        "w2": (0.05 * jax.random.normal(k[4], (hidden, dim), jnp.float32)
               ).astype(jnp.bfloat16),
        "b2": 0.05 * jax.random.normal(k[5], (1, dim), jnp.float32),
        "gamma": init_value * jnp.ones((1, dim), jnp.float32),
    }


def ref_forward(x_nchw, params, eps=1e-6):
    """Pure-JAX reference mirroring the PyTorch Block.forward (eval mode, f32 math)."""
    x = jnp.transpose(x_nchw, (0, 2, 3, 1))  # NHWC
    C = x.shape[-1]
    dw = params["dw_w"].astype(jnp.float32).reshape(7, 7, 1, C)
    y = lax.conv_general_dilated(
        x, dw, window_strides=(1, 1), padding=((3, 3), (3, 3)),
        dimension_numbers=("NHWC", "HWIO", "NHWC"), feature_group_count=C)
    y = y + params["dw_b"][0]
    mean = jnp.mean(y, axis=-1, keepdims=True)
    var = jnp.mean((y - mean) ** 2, axis=-1, keepdims=True)
    y = (y - mean) * lax.rsqrt(var + eps)
    y = y * params["ln_w"][0] + params["ln_b"][0]
    y = y @ params["w1"].astype(jnp.float32) + params["b1"][0]
    y = 0.5 * y * (1.0 + lax.erf(y * jnp.float32(0.7071067811865476)))
    y = y @ params["w2"].astype(jnp.float32) + params["b2"][0]
    y = y * params["gamma"][0]
    return jnp.transpose(x + y, (0, 3, 1, 2))


if __name__ == "__main__":
    B, C, H, W = 2, 64, 16, 16
    key = jax.random.PRNGKey(0)
    kx, kp = jax.random.split(key)
    x = jax.random.normal(kx, (B, C, H, W), jnp.float32)
    # init_value=1.0 so the MLP branch contributes meaningfully to the check
    params = init_params(kp, C, init_value=1.0)

    out = jax.block_until_ready(convnext_block(x, params, tile_h=8))
    ref = ref_forward(x, params)

    assert out.shape == (B, C, H, W)
    max_err = float(jnp.max(jnp.abs(out - ref)))
    # bf16 matmul operands vs f32 reference -> loosened tolerance
    assert jnp.allclose(out, ref, atol=3e-2, rtol=3e-2), max_err
    print("KERNEL_OK")
</pallas_src>

<mosaic_0001>
module attributes {stable_mosaic.version = 11 : i64} {
  func.func @_block_kernel(%arg0: i32, %arg1: i32, %arg2: memref<1x16x16x64xf32, #tpu.memory_space<vmem>>, %arg3: memref<7x7x64xf32, #tpu.memory_space<vmem>>, %arg4: memref<1x64xf32, #tpu.memory_space<vmem>>, %arg5: memref<1x64xf32, #tpu.memory_space<vmem>>, %arg6: memref<1x64xf32, #tpu.memory_space<vmem>>, %arg7: memref<64x256xbf16, #tpu.memory_space<vmem>>, %arg8: memref<1x256xf32, #tpu.memory_space<vmem>>, %arg9: memref<256x64xbf16, #tpu.memory_space<vmem>>, %arg10: memref<1x64xf32, #tpu.memory_space<vmem>>, %arg11: memref<1x64xf32, #tpu.memory_space<vmem>>, %arg12: memref<1x128x64xf32, #tpu.memory_space<vmem>>, %arg13: memref<22x22x64xf32, #tpu.memory_space<vmem>>) attributes {dimension_semantics = [#tpu.dimension_semantics<parallel>, #tpu.dimension_semantics<arbitrary>], iteration_bounds = array<i64: 2, 2>, scalar_prefetch = 0 : i64, scratch_operands = 1 : i64, tpu.core_type = #tpu.core_type<tc>, window_params = [{transform_indices = @transform_0, window_bounds = array<i64: 1, 16, 16, 64>}, {pipeline_mode = #tpu.pipeline_mode<synchronous>, transform_indices = @transform_1, window_bounds = array<i64: 7, 7, 64>}, {pipeline_mode = #tpu.pipeline_mode<synchronous>, transform_indices = @transform_2, window_bounds = array<i64: 1, 64>}, {pipeline_mode = #tpu.pipeline_mode<synchronous>, transform_indices = @transform_3, window_bounds = array<i64: 1, 64>}, {pipeline_mode = #tpu.pipeline_mode<synchronous>, transform_indices = @transform_4, window_bounds = array<i64: 1, 64>}, {pipeline_mode = #tpu.pipeline_mode<synchronous>, transform_indices = @transform_5, window_bounds = array<i64: 64, 256>}, {pipeline_mode = #tpu.pipeline_mode<synchronous>, transform_indices = @transform_6, window_bounds = array<i64: 1, 256>}, {pipeline_mode = #tpu.pipeline_mode<synchronous>, transform_indices = @transform_7, window_bounds = array<i64: 256, 64>}, {pipeline_mode = #tpu.pipeline_mode<synchronous>, transform_indices = @transform_8, window_bounds = array<i64: 1, 64>}, {pipeline_mode = #tpu.pipeline_mode<synchronous>, transform_indices = @transform_9, window_bounds = array<i64: 1, 64>}, {transform_indices = @transform_10, window_bounds = array<i64: 1, 128, 64>}]} {
    %c0_i32 = arith.constant 0 : i32
    %0 = arith.cmpi eq, %arg1, %c0_i32 : i32
    %1 = arith.extui %0 : i1 to i32
    %c0_i32_0 = arith.constant 0 : i32
    %2 = arith.cmpi ne, %1, %c0_i32_0 : i32
    scf.if %2 {
      %cst_32 = arith.constant 0.000000e+00 : f32
      %77 = vector.broadcast %cst_32 : f32 to vector<22x22x64xf32>
      %c0_33 = arith.constant 0 : index
      %c0_34 = arith.constant 0 : index
      %c0_35 = arith.constant 0 : index
      %78 = vector.load %arg13[%c0_33, %c0_34, %c0_35] : memref<22x22x64xf32, #tpu.memory_space<vmem>>, vector<22x22x64xf32>
      tpu.vector_store %arg13[%c0_33, %c0_34, %c0_35], %77 {strides = array<i32>} : memref<22x22x64xf32, #tpu.memory_space<vmem>>, vector<22x22x64xf32>,
      %c0_36 = arith.constant 0 : index
      %c0_37 = arith.constant 0 : index
      %c0_38 = arith.constant 0 : index
      %c0_39 = arith.constant 0 : index
      %79 = vector.load %arg2[%c0_36, %c0_37, %c0_38, %c0_39] : memref<1x16x16x64xf32, #tpu.memory_space<vmem>>, vector<1x16x16x64xf32>
      %80 = vector.shape_cast %79 : vector<1x16x16x64xf32> to vector<16x16x64xf32>
      %c3_40 = arith.constant 3 : index
      %c3_41 = arith.constant 3 : index
      %c0_42 = arith.constant 0 : index
      %81 = vector.load %arg13[%c3_40, %c3_41, %c0_42] : memref<22x22x64xf32, #tpu.memory_space<vmem>>, vector<16x16x64xf32>
      tpu.vector_store %arg13[%c3_40, %c3_41, %c0_42], %80 {strides = array<i32>} : memref<22x22x64xf32, #tpu.memory_space<vmem>>, vector<16x16x64xf32>,
    } else {
    }
    %c8_i32 = arith.constant 8 : i32
    %3 = arith.muli %arg1, %c8_i32 : i32
    %4 = tpu.assume_multiple %3, 8 : i32
    %cst = arith.constant 0.000000e+00 : f32
    %5 = vector.broadcast %cst : f32 to vector<8x16x64xf32>
    %c0_i32_1 = arith.constant 0 : i32
    %c7_i32 = arith.constant 7 : i32
    %6 = arith.addi %c0_i32_1, %c7_i32 : i32
    %c1_i32 = arith.constant 1 : i32
    %7 = scf.for %arg14 = %c0_i32_1 to %6 step %c1_i32 iter_args(%arg15 = %5) -> (vector<8x16x64xf32>)  : i32 {
      %77 = arith.addi %4, %arg14 : i32
      %78 = arith.index_cast %77 : i32 to index
      %c0_32 = arith.constant 0 : index
      %c0_33 = arith.constant 0 : index
      %79 = vector.load %arg13[%78, %c0_32, %c0_33] : memref<22x22x64xf32, #tpu.memory_space<vmem>>, vector<8x22x64xf32>
      %80 = arith.index_cast %arg14 : i32 to index
      %c0_34 = arith.constant 0 : index
      %c0_35 = arith.constant 0 : index
      %81 = vector.load %arg3[%80, %c0_34, %c0_35] : memref<7x7x64xf32, #tpu.memory_space<vmem>>, vector<1x7x64xf32>
      %82 = vector.shape_cast %81 : vector<1x7x64xf32> to vector<7x64xf32>
      %83 = vector.extract_strided_slice %79 {offsets = [0, 0, 0], sizes = [8, 16, 64], strides = [1, 1, 1]} : vector<8x22x64xf32> to vector<8x16x64xf32>
      %84 = vector.extract_strided_slice %82 {offsets = [0, 0], sizes = [1, 64], strides = [1, 1]} : vector<7x64xf32> to vector<1x64xf32>
      %85 = vector.shape_cast %84 : vector<1x64xf32> to vector<64xf32>
      %86 = vector.shape_cast %85 : vector<64xf32> to vector<1x1x64xf32>
      %87 = vector.broadcast %86 : vector<1x1x64xf32> to vector<8x16x64xf32>
      %88 = arith.mulf %83, %87 : vector<8x16x64xf32>
      %89 = arith.addf %arg15, %88 : vector<8x16x64xf32>
      %90 = vector.extract_strided_slice %79 {offsets = [0, 1, 0], sizes = [8, 16, 64], strides = [1, 1, 1]} : vector<8x22x64xf32> to vector<8x16x64xf32>
      %91 = vector.extract_strided_slice %82 {offsets = [1, 0], sizes = [1, 64], strides = [1, 1]} : vector<7x64xf32> to vector<1x64xf32>
      %92 = vector.shape_cast %91 : vector<1x64xf32> to vector<64xf32>
      %93 = vector.shape_cast %92 : vector<64xf32> to vector<1x1x64xf32>
      %94 = vector.broadcast %93 : vector<1x1x64xf32> to vector<8x16x64xf32>
      %95 = arith.mulf %90, %94 : vector<8x16x64xf32>
      %96 = arith.addf %89, %95 : vector<8x16x64xf32>
      %97 = vector.extract_strided_slice %79 {offsets = [0, 2, 0], sizes = [8, 16, 64], strides = [1, 1, 1]} : vector<8x22x64xf32> to vector<8x16x64xf32>
      %98 = vector.extract_strided_slice %82 {offsets = [2, 0], sizes = [1, 64], strides = [1, 1]} : vector<7x64xf32> to vector<1x64xf32>
      %99 = vector.shape_cast %98 : vector<1x64xf32> to vector<64xf32>
      %100 = vector.shape_cast %99 : vector<64xf32> to vector<1x1x64xf32>
      %101 = vector.broadcast %100 : vector<1x1x64xf32> to vector<8x16x64xf32>
      %102 = arith.mulf %97, %101 : vector<8x16x64xf32>
      %103 = arith.addf %96, %102 : vector<8x16x64xf32>
      %104 = vector.extract_strided_slice %79 {offsets = [0, 3, 0], sizes = [8, 16, 64], strides = [1, 1, 1]} : vector<8x22x64xf32> to vector<8x16x64xf32>
      %105 = vector.extract_strided_slice %82 {offsets = [3, 0], sizes = [1, 64], strides = [1, 1]} : vector<7x64xf32> to vector<1x64xf32>
      %106 = vector.shape_cast %105 : vector<1x64xf32> to vector<64xf32>
      %107 = vector.shape_cast %106 : vector<64xf32> to vector<1x1x64xf32>
      %108 = vector.broadcast %107 : vector<1x1x64xf32> to vector<8x16x64xf32>
      %109 = arith.mulf %104, %108 : vector<8x16x64xf32>
      %110 = arith.addf %103, %109 : vector<8x16x64xf32>
      %111 = vector.extract_strided_slice %79 {offsets = [0, 4, 0], sizes = [8, 16, 64], strides = [1, 1, 1]} : vector<8x22x64xf32> to vector<8x16x64xf32>
      %112 = vector.extract_strided_slice %82 {offsets = [4, 0], sizes = [1, 64], strides = [1, 1]} : vector<7x64xf32> to vector<1x64xf32>
      %113 = vector.shape_cast %112 : vector<1x64xf32> to vector<64xf32>
      %114 = vector.shape_cast %113 : vector<64xf32> to vector<1x1x64xf32>
      %115 = vector.broadcast %114 : vector<1x1x64xf32> to vector<8x16x64xf32>
      %116 = arith.mulf %111, %115 : vector<8x16x64xf32>
      %117 = arith.addf %110, %116 : vector<8x16x64xf32>
      %118 = vector.extract_strided_slice %79 {offsets = [0, 5, 0], sizes = [8, 16, 64], strides = [1, 1, 1]} : vector<8x22x64xf32> to vector<8x16x64xf32>
      %119 = vector.extract_strided_slice %82 {offsets = [5, 0], sizes = [1, 64], strides = [1, 1]} : vector<7x64xf32> to vector<1x64xf32>
      %120 = vector.shape_cast %119 : vector<1x64xf32> to vector<64xf32>
      %121 = vector.shape_cast %120 : vector<64xf32> to vector<1x1x64xf32>
      %122 = vector.broadcast %121 : vector<1x1x64xf32> to vector<8x16x64xf32>
      %123 = arith.mulf %118, %122 : vector<8x16x64xf32>
      %124 = arith.addf %117, %123 : vector<8x16x64xf32>
      %125 = vector.extract_strided_slice %79 {offsets = [0, 6, 0], sizes = [8, 16, 64], strides = [1, 1, 1]} : vector<8x22x64xf32> to vector<8x16x64xf32>
      %126 = vector.extract_strided_slice %82 {offsets = [6, 0], sizes = [1, 64], strides = [1, 1]} : vector<7x64xf32> to vector<1x64xf32>
      %127 = vector.shape_cast %126 : vector<1x64xf32> to vector<64xf32>
      %128 = vector.shape_cast %127 : vector<64xf32> to vector<1x1x64xf32>
      %129 = vector.broadcast %128 : vector<1x1x64xf32> to vector<8x16x64xf32>
      %130 = arith.mulf %125, %129 : vector<8x16x64xf32>
      %131 = arith.addf %124, %130 : vector<8x16x64xf32>
      scf.yield %131 : vector<8x16x64xf32>
    }
    %c7_i32_2 = arith.constant 7 : i32
    %c0 = arith.constant 0 : index
    %c0_3 = arith.constant 0 : index
    %8 = vector.load %arg4[%c0, %c0_3] : memref<1x64xf32, #tpu.memory_space<vmem>>, vector<1x64xf32>
    %9 = vector.shape_cast %8 : vector<1x64xf32> to vector<64xf32>
    %10 = vector.shape_cast %9 : vector<64xf32> to vector<1x1x64xf32>
    %11 = vector.broadcast %10 : vector<1x1x64xf32> to vector<8x16x64xf32>
    %12 = arith.addf %7, %11 : vector<8x16x64xf32>
    %13 = vector.shape_cast %12 : vector<8x16x64xf32> to vector<128x64xf32>
    %cst_4 = arith.constant dense<0.000000e+00> : vector<128xf32>
    %14 = vector.multi_reduction <add>, %13, %cst_4 [1] : vector<128x64xf32> to vector<128xf32>
    %15 = vector.shape_cast %14 : vector<128xf32> to vector<128x1xf32>
    %cst_5 = arith.constant 6.400000e+01 : f32
    %16 = vector.broadcast %cst_5 : f32 to vector<128x1xf32>
    %17 = arith.divf %15, %16 : vector<128x1xf32>
    %18 = vector.broadcast %17 : vector<128x1xf32> to vector<128x64xf32>
    %19 = arith.subf %13, %18 : vector<128x64xf32>
    %20 = arith.mulf %19, %19 : vector<128x64xf32>
    %cst_6 = arith.constant dense<0.000000e+00> : vector<128xf32>
    %21 = vector.multi_reduction <add>, %20, %cst_6 [1] : vector<128x64xf32> to vector<128xf32>
    %22 = vector.shape_cast %21 : vector<128xf32> to vector<128x1xf32>
    %cst_7 = arith.constant 6.400000e+01 : f32
    %23 = vector.broadcast %cst_7 : f32 to vector<128x1xf32>
    %24 = arith.divf %22, %23 : vector<128x1xf32>
    %cst_8 = arith.constant 9.99999997E-7 : f32
    %25 = vector.broadcast %cst_8 : f32 to vector<128x1xf32>
    %26 = arith.addf %24, %25 : vector<128x1xf32>
    %27 = math.rsqrt %26 : vector<128x1xf32>
    %28 = vector.broadcast %27 : vector<128x1xf32> to vector<128x64xf32>
    %29 = arith.mulf %19, %28 : vector<128x64xf32>
    %c0_9 = arith.constant 0 : index
    %c0_10 = arith.constant 0 : index
    %30 = vector.load %arg5[%c0_9, %c0_10] : memref<1x64xf32, #tpu.memory_space<vmem>>, vector<1x64xf32>
    %31 = vector.shape_cast %30 : vector<1x64xf32> to vector<64xf32>
    %32 = vector.shape_cast %31 : vector<64xf32> to vector<1x64xf32>
    %33 = vector.broadcast %32 : vector<1x64xf32> to vector<128x64xf32>
    %34 = arith.mulf %29, %33 : vector<128x64xf32>
    %c0_11 = arith.constant 0 : index
    %c0_12 = arith.constant 0 : index
    %35 = vector.load %arg6[%c0_11, %c0_12] : memref<1x64xf32, #tpu.memory_space<vmem>>, vector<1x64xf32>
    %36 = vector.shape_cast %35 : vector<1x64xf32> to vector<64xf32>
    %37 = vector.shape_cast %36 : vector<64xf32> to vector<1x64xf32>
    %38 = vector.broadcast %37 : vector<1x64xf32> to vector<128x64xf32>
    %39 = arith.addf %34, %38 : vector<128x64xf32>
    %40 = arith.truncf %39 : vector<128x64xf32> to vector<128x64xbf16>
    %c0_13 = arith.constant 0 : index
    %c0_14 = arith.constant 0 : index
    %41 = vector.load %arg7[%c0_13, %c0_14] : memref<64x256xbf16, #tpu.memory_space<vmem>>, vector<64x256xbf16>
    %cst_15 = arith.constant dense<0.000000e+00> : vector<128x256xf32>
    %42 = tpu.matmul %40, %41, %cst_15 {dimension_numbers = #tpu.dot_dimension_numbers<[1], [0], [0], [1], [0, 0, 1, 1], [], []>} : vector<128x64xbf16>, vector<64x256xbf16>, vector<128x256xf32> -> vector<128x256xf32>
    %c0_16 = arith.constant 0 : index
    %c0_17 = arith.constant 0 : index
    %43 = vector.load %arg8[%c0_16, %c0_17] : memref<1x256xf32, #tpu.memory_space<vmem>>, vector<1x256xf32>
    %44 = vector.shape_cast %43 : vector<1x256xf32> to vector<256xf32>
    %45 = vector.shape_cast %44 : vector<256xf32> to vector<1x256xf32>
    %46 = vector.broadcast %45 : vector<1x256xf32> to vector<128x256xf32>
    %47 = arith.addf %42, %46 : vector<128x256xf32>
    %cst_18 = arith.constant 5.000000e-01 : f32
    %48 = vector.broadcast %cst_18 : f32 to vector<128x256xf32>
    %49 = arith.mulf %48, %47 : vector<128x256xf32>
    %cst_19 = arith.constant 0.707106769 : f32
    %50 = vector.broadcast %cst_19 : f32 to vector<128x256xf32>
    %51 = arith.mulf %47, %50 : vector<128x256xf32>
    %52 = math.erf %51 : vector<128x256xf32>
    %cst_20 = arith.constant 1.000000e+00 : f32
    %53 = vector.broadcast %cst_20 : f32 to vector<128x256xf32>
    %54 = arith.addf %53, %52 : vector<128x256xf32>
    %55 = arith.mulf %49, %54 : vector<128x256xf32>
    %56 = arith.truncf %55 : vector<128x256xf32> to vector<128x256xbf16>
    %c0_21 = arith.constant 0 : index
    %c0_22 = arith.constant 0 : index
    %57 = vector.load %arg9[%c0_21, %c0_22] : memref<256x64xbf16, #tpu.memory_space<vmem>>, vector<256x64xbf16>
    %cst_23 = arith.constant dense<0.000000e+00> : vector<128x64xf32>
    %58 = tpu.matmul %56, %57, %cst_23 {dimension_numbers = #tpu.dot_dimension_numbers<[1], [0], [0], [1], [0, 0, 1, 1], [], []>} : vector<128x256xbf16>, vector<256x64xbf16>, vector<128x64xf32> -> vector<128x64xf32>
    %c0_24 = arith.constant 0 : index
    %c0_25 = arith.constant 0 : index
    %59 = vector.load %arg10[%c0_24, %c0_25] : memref<1x64xf32, #tpu.memory_space<vmem>>, vector<1x64xf32>
    %60 = vector.shape_cast %59 : vector<1x64xf32> to vector<64xf32>
    %61 = vector.shape_cast %60 : vector<64xf32> to vector<1x64xf32>
    %62 = vector.broadcast %61 : vector<1x64xf32> to vector<128x64xf32>
    %63 = arith.addf %58, %62 : vector<128x64xf32>
    %c0_26 = arith.constant 0 : index
    %c0_27 = arith.constant 0 : index
    %64 = vector.load %arg11[%c0_26, %c0_27] : memref<1x64xf32, #tpu.memory_space<vmem>>, vector<1x64xf32>
    %65 = vector.shape_cast %64 : vector<1x64xf32> to vector<64xf32>
    %66 = vector.shape_cast %65 : vector<64xf32> to vector<1x64xf32>
    %67 = vector.broadcast %66 : vector<1x64xf32> to vector<128x64xf32>
    %68 = arith.mulf %63, %67 : vector<128x64xf32>
    %c3_i32 = arith.constant 3 : i32
    %69 = arith.addi %4, %c3_i32 : i32
    %70 = arith.index_cast %69 : i32 to index
    %c3 = arith.constant 3 : index
    %c0_28 = arith.constant 0 : index
    %71 = vector.load %arg13[%70, %c3, %c0_28] : memref<22x22x64xf32, #tpu.memory_space<vmem>>, vector<8x16x64xf32>
    %72 = vector.shape_cast %71 : vector<8x16x64xf32> to vector<128x64xf32>
    %73 = arith.addf %72, %68 : vector<128x64xf32>
    %c0_29 = arith.constant 0 : index
    %c0_30 = arith.constant 0 : index
    %c0_31 = arith.constant 0 : index
    %74 = vector.load %arg12[%c0_29, %c0_30, %c0_31] : memref<1x128x64xf32, #tpu.memory_space<vmem>>, vector<1x128x64xf32>
    %75 = vector.shape_cast %74 : vector<1x128x64xf32> to vector<128x64xf32>
    %76 = vector.shape_cast %73 : vector<128x64xf32> to vector<1x128x64xf32>
    tpu.vector_store %arg12[%c0_29, %c0_30, %c0_31], %76 {strides = array<i32>} : memref<1x128x64xf32, #tpu.memory_space<vmem>>, vector<1x128x64xf32>,
    return
  }
  func.func @transform_0(%arg0: i32, %arg1: i32) -> (i32, i32, i32, i32) {
    %c0_i32 = arith.constant 0 : i32
    %c0_i32_0 = arith.constant 0 : i32
    %c0_i32_1 = arith.constant 0 : i32
    %c0_i32_2 = arith.constant 0 : i32
    return %arg0, %c0_i32, %c0_i32_0, %c0_i32_1 : i32, i32, i32, i32
  }
  func.func @transform_1(%arg0: i32, %arg1: i32) -> (i32, i32, i32) {
    %c0_i32 = arith.constant 0 : i32
    %c0_i32_0 = arith.constant 0 : i32
    %c0_i32_1 = arith.constant 0 : i32
    %c0_i32_2 = arith.constant 0 : i32
    return %c0_i32, %c0_i32_0, %c0_i32_1 : i32, i32, i32
  }
  func.func @transform_2(%arg0: i32, %arg1: i32) -> (i32, i32) {
    %c0_i32 = arith.constant 0 : i32
    %c0_i32_0 = arith.constant 0 : i32
    %c0_i32_1 = arith.constant 0 : i32
    return %c0_i32, %c0_i32_0 : i32, i32
  }
  func.func @transform_3(%arg0: i32, %arg1: i32) -> (i32, i32) {
    %c0_i32 = arith.constant 0 : i32
    %c0_i32_0 = arith.constant 0 : i32
    %c0_i32_1 = arith.constant 0 : i32
    return %c0_i32, %c0_i32_0 : i32, i32
  }
  func.func @transform_4(%arg0: i32, %arg1: i32) -> (i32, i32) {
    %c0_i32 = arith.constant 0 : i32
    %c0_i32_0 = arith.constant 0 : i32
    %c0_i32_1 = arith.constant 0 : i32
    return %c0_i32, %c0_i32_0 : i32, i32
  }
  func.func @transform_5(%arg0: i32, %arg1: i32) -> (i32, i32) {
    %c0_i32 = arith.constant 0 : i32
    %c0_i32_0 = arith.constant 0 : i32
    %c0_i32_1 = arith.constant 0 : i32
    return %c0_i32, %c0_i32_0 : i32, i32
  }
  func.func @transform_6(%arg0: i32, %arg1: i32) -> (i32, i32) {
    %c0_i32 = arith.constant 0 : i32
    %c0_i32_0 = arith.constant 0 : i32
    %c0_i32_1 = arith.constant 0 : i32
    return %c0_i32, %c0_i32_0 : i32, i32
  }
  func.func @transform_7(%arg0: i32, %arg1: i32) -> (i32, i32) {
    %c0_i32 = arith.constant 0 : i32
    %c0_i32_0 = arith.constant 0 : i32
    %c0_i32_1 = arith.constant 0 : i32
    return %c0_i32, %c0_i32_0 : i32, i32
  }
  func.func @transform_8(%arg0: i32, %arg1: i32) -> (i32, i32) {
    %c0_i32 = arith.constant 0 : i32
    %c0_i32_0 = arith.constant 0 : i32
    %c0_i32_1 = arith.constant 0 : i32
    return %c0_i32, %c0_i32_0 : i32, i32
  }
  func.func @transform_9(%arg0: i32, %arg1: i32) -> (i32, i32) {
    %c0_i32 = arith.constant 0 : i32
    %c0_i32_0 = arith.constant 0 : i32
    %c0_i32_1 = arith.constant 0 : i32
    return %c0_i32, %c0_i32_0 : i32, i32
  }
  func.func @transform_10(%arg0: i32, %arg1: i32) -> (i32, i32, i32) {
    %c0_i32 = arith.constant 0 : i32
    %c0_i32_0 = arith.constant 0 : i32
    return %arg0, %arg1, %c0_i32 : i32, i32, i32
  }
}

</mosaic_0001>

<llo_original>
// kernel: tpu_custom_call.1
$region0: #{tpu_custom_call.1}
  #allocation0 [shape = 'u32[]', space=smem, size = 0x4, offset = 0x4, fixed_abs, tag = 'smem constant byte address 0x4 - core index']
  #allocation1 [shape = 'u32[144,128]{1,0:T(1,128)}', space=vmem, size = 0x12000, scoped, tag = 'internal scratch']
  #allocation2 [shape = 'f32[22,22,64]{2,1,0:T(8,128)}', space=vmem, size = 0x42000, scoped, tag = 'scratch operand']
  %s0 = inlined_call_operand.hbm [shape: f32[2,16,16,64], index: 0, kind: input, shape index: {}]
  %s1 = inlined_call_operand.hbm [shape: f32[7,7,64], index: 1, kind: input, shape index: {}]
  %s2 = inlined_call_operand.hbm [shape: f32[1,64], index: 2, kind: input, shape index: {}]
  %s3 = inlined_call_operand.hbm [shape: f32[1,64], index: 3, kind: input, shape index: {}]
  %s4 = inlined_call_operand.hbm [shape: f32[1,64], index: 4, kind: input, shape index: {}]
  %s5 = inlined_call_operand.hbm [shape: bf16[64,256], index: 5, kind: input, shape index: {}]
  %s6 = inlined_call_operand.hbm [shape: f32[1,256], index: 6, kind: input, shape index: {}]
  %s7 = inlined_call_operand.hbm [shape: bf16[256,64], index: 7, kind: input, shape index: {}]
  %s8 = inlined_call_operand.hbm [shape: f32[1,64], index: 8, kind: input, shape index: {}]
  %s9 = inlined_call_operand.hbm [shape: f32[1,64], index: 9, kind: input, shape index: {}]
  %s10 = inlined_call_operand.hbm [shape: f32[2,256,64], index: 10, kind: output, shape index: {}]
  %s11 = sld [smem:[#allocation0]]
  $region124: #{tpu_custom_call.1} parent=0
    _
  %s13 = ssub.s32 1, %s11
  %s14 = scalar_select 0, %s13, %s11
  $region1: #{tpu_custom_call.1} parent=0
    #allocation3 [shape = 'u8[262144]{0}', space=vmem, size = 0x40000, scoped, tag = 'input window, operand 0']
    #allocation4 [shape = 's32[2]{0}', space=sflag, size = 0x8, scoped, tag = 'scoped memory for tpu_custom_call.1']
    #allocation5 [shape = 's32[2]{0}', space=sflag, size = 0x8, scoped, tag = 'scoped memory for tpu_custom_call.1']
    #allocation6 [shape = 'u8[28672]{0}', space=vmem, size = 0x7000, scoped, tag = 'input window, operand 1, single buffered']
    #allocation7 [shape = 's32[1]{0}', space=sflag, size = 0x4, scoped, tag = 'scoped memory for tpu_custom_call.1']
    #allocation8 [shape = 'u8[512]{0}', space=vmem, size = 0x400, scoped, tag = 'input window, operand 2, single buffered']
    #allocation9 [shape = 'u8[512]{0}', space=vmem, size = 0x400, scoped, tag = 'input window, operand 3, single buffered']
    #allocation10 [shape = 's32[1]{0}', space=sflag, size = 0x4, scoped, tag = 'scoped memory for tpu_custom_call.1']
    #allocation11 [shape = 'u8[512]{0}', space=vmem, size = 0x400, scoped, tag = 'input window, operand 4, single buffered']
    #allocation12 [shape = 'u8[32768]{0}', space=vmem, size = 0x8000, scoped, tag = 'input window, operand 5, single buffered']
    #allocation13 [shape = 's32[1]{0}', space=sflag, size = 0x4, scoped, tag = 'scoped memory for tpu_custom_call.1']
    #allocation14 [shape = 'u8[1024]{0}', space=vmem, size = 0x400, scoped, tag = 'input window, operand 6, single buffered']
    #allocation15 [shape = 'u8[65536]{0}', space=vmem, size = 0x10000, scoped, tag = 'input window, operand 7, single buffered']
    #allocation16 [shape = 's32[1]{0}', space=sflag, size = 0x4, scoped, tag = 'scoped memory for tpu_custom_call.1']
    #allocation17 [shape = 'u8[512]{0}', space=vmem, size = 0x400, scoped, tag = 'input window, operand 8, single buffered']
    #allocation18 [shape = 'u8[512]{0}', space=vmem, size = 0x400, scoped, tag = 'input window, operand 9, single buffered']
    #allocation19 [shape = 's32[1]{0}', space=sflag, size = 0x4, scoped, tag = 'scoped memory for tpu_custom_call.1']
    #allocation20 [shape = 'u8[131072]{0}', space=vmem, size = 0x20000, scoped, tag = 'output window, operand 0']
    %15 = vsyncpa [#allocation4], 0
    %s16 = scalar_lea.sflag [#allocation4], 1
    %17 = vsyncpa %s16, 0
    %18 = vsyncpa [#allocation7], 0
    %19 = vsyncpa [#allocation10], 0
    %20 = vsyncpa [#allocation13], 0
    %21 = vsyncpa [#allocation16], 0
    %22 = vsyncpa [#allocation19], 0
    %23 = vsyncpa [#allocation5], 0
    %s24 = scalar_lea.sflag [#allocation5], 1
    %25 = vsyncpa %s24, 0
    loop: start=0, step=1, limit=6
    $region2: #{tpu_custom_call.1} parent=1 // loop_pre_header
      _
    $region3: #{tpu_custom_call.1} parent=1 // loop_header
      %s27 = sphi 0, %s31
      %p28 = scmp.ge.s32.totalorder %s27, 6
      %s34 = sphi 0, %s46
      %s35 = sphi 0, %s42
      %s36 = sphi 0, %s34
      %s37 = sphi 0, %s35
      %s38 = sphi 0, %s36
      %s39 = sphi 0, %s37
      %s49 = sphi 0, %s51
      %s52 = sphi 0, %s49
      %s53 = sphi 0, %s52
      %s69 = sphi 0, %s53
      %s73 = sphi 0, %s73
      %s75 = sphi 0, %s73
      %s76 = sphi 0, %s75
      %s90 = sphi 0, %s76
      %s94 = sphi 0, %s94
      %s96 = sphi 0, %s94
      %s97 = sphi 0, %s96
      %s111 = sphi 0, %s97
      %s115 = sphi 0, %s115
      %s117 = sphi 0, %s115
      %s118 = sphi 0, %s117
      %s132 = sphi 0, %s118
      %s136 = sphi 0, %s136
      %s138 = sphi 0, %s136
      %s139 = sphi 0, %s138
      %s153 = sphi 0, %s139
      %s157 = sphi 0, %s157
      %s159 = sphi 0, %s157
      %s160 = sphi 0, %s159
      %s174 = sphi 0, %s160
      %s178 = sphi 0, %s178
      %s180 = sphi 0, %s178
      %s181 = sphi 0, %s180
      %s195 = sphi 0, %s181
      %s199 = sphi 0, %s199
      %s201 = sphi 0, %s199
      %s202 = sphi 0, %s201
      %s216 = sphi 0, %s202
      %s220 = sphi 0, %s220
      %s222 = sphi 0, %s220
      %s223 = sphi 0, %s222
      %s237 = sphi 0, %s223
      %s241 = sphi 0, %s241
      %s243 = sphi 0, %s241
      %s244 = sphi 0, %s243
      %s258 = sphi 0, %s244
      %s266 = sphi 0, %s268
      %s269 = sphi 0, %s266
      %s270 = sphi 0, %s269
      %s286 = sphi 0, %s270
    $region4: #{tpu_custom_call.1} parent=1 // loop_header_branch
      %30 = sbr.rel (%p28) target = $region8
    $region5: #{tpu_custom_call.1} parent=1 // loop_body
      %s32 = ssub.s32 %s27, 1
      %s33 = ssub.s32 %s27, 2
      %s40 = sadd.s32 1, %s35
      %p41 = scmp.ge.s32.totalorder %s40, 2
      %s42 = scalar_select %p41, 0, %s40
      %s43 = sadd.s32 1, %s34
      %s44 = scalar_select %p41, %s43, %s34
      %p45 = scmp.ge.s32.totalorder %s44, 2
      %s46 = scalar_select %p45, 0, %s44
      %s47 = ssub.s32 %s34, %s46
      %p48 = scmp.eq.s32.totalorder %s47, 0
      %s50 = sadd.s32 %s49, 1
      %s51 = scalar_select %p48, %s49, %s50
      %p54 = pneg %p48
      %p55 = scmp.eq.s32.totalorder %s27, 3
      %p56 = por %p54, %p55
      %p57 = scmp.ne.s32.totalorder %s49, %s52
      %p58 = scmp.eq.s32.totalorder %s27, 0
      %p59 = por %p57, %p58
      %p60 = scmp.ne.s32.totalorder %s49, %s52
      %p61 = scmp.eq.s32.totalorder %s32, 3
      %p62 = por %p60, %p61
      %p63 = scmp.ne.s32.totalorder %s52, %s53
      %p64 = scmp.eq.s32.totalorder %s32, 0
      %p65 = por %p63, %p64
      %p66 = scmp.ne.s32.totalorder %s52, %s53
      %p67 = scmp.eq.s32.totalorder %s33, 3
      %p68 = por %p66, %p67
      %p70 = scmp.ne.s32.totalorder %s53, %s69
      %p71 = scmp.eq.s32.totalorder %s33, 0
      %p72 = por %p70, %p71
      %s74 = sadd.s32 %s73, 1
      %p77 = scmp.eq.s32.totalorder %s27, 3
      %p78 = scmp.ne.s32.totalorder %s73, %s75
      %p79 = scmp.eq.s32.totalorder %s27, 0
      %p80 = por %p78, %p79
      %p81 = scmp.ne.s32.totalorder %s73, %s75
      %p82 = scmp.eq.s32.totalorder %s32, 3
      %p83 = por %p81, %p82
      %p84 = scmp.ne.s32.totalorder %s75, %s76
      %p85 = scmp.eq.s32.totalorder %s32, 0
      %p86 = por %p84, %p85
      %p87 = scmp.ne.s32.totalorder %s75, %s76
      %p88 = scmp.eq.s32.totalorder %s33, 3
      %p89 = por %p87, %p88
      %p91 = scmp.ne.s32.totalorder %s76, %s90
      %p92 = scmp.eq.s32.totalorder %s33, 0
      %p93 = por %p91, %p92
      %s95 = sadd.s32 %s94, 1
      %p98 = scmp.eq.s32.totalorder %s27, 3
      %p99 = scmp.ne.s32.totalorder %s94, %s96
      %p100 = scmp.eq.s32.totalorder %s27, 0
      %p101 = por %p99, %p100
      %p102 = scmp.ne.s32.totalorder %s94, %s96
      %p103 = scmp.eq.s32.totalorder %s32, 3
      %p104 = por %p102, %p103
      %p105 = scmp.ne.s32.totalorder %s96, %s97
      %p106 = scmp.eq.s32.totalorder %s32, 0
      %p107 = por %p105, %p106
      %p108 = scmp.ne.s32.totalorder %s96, %s97
      %p109 = scmp.eq.s32.totalorder %s33, 3
      %p110 = por %p108, %p109
      %p112 = scmp.ne.s32.totalorder %s97, %s111
      %p113 = scmp.eq.s32.totalorder %s33, 0
      %p114 = por %p112, %p113
      %s116 = sadd.s32 %s115, 1
      %p119 = scmp.eq.s32.totalorder %s27, 3
      %p120 = scmp.ne.s32.totalorder %s115, %s117
      %p121 = scmp.eq.s32.totalorder %s27, 0
      %p122 = por %p120, %p121
      %p123 = scmp.ne.s32.totalorder %s115, %s117
      %p124 = scmp.eq.s32.totalorder %s32, 3
      %p125 = por %p123, %p124
      %p126 = scmp.ne.s32.totalorder %s117, %s118
      %p127 = scmp.eq.s32.totalorder %s32, 0
      %p128 = por %p126, %p127
      %p129 = scmp.ne.s32.totalorder %s117, %s118
      %p130 = scmp.eq.s32.totalorder %s33, 3
      %p131 = por %p129, %p130
      %p133 = scmp.ne.s32.totalorder %s118, %s132
      %p134 = scmp.eq.s32.totalorder %s33, 0
      %p135 = por %p133, %p134
      %s137 = sadd.s32 %s136, 1
      %p140 = scmp.eq.s32.totalorder %s27, 3
      %p141 = scmp.ne.s32.totalorder %s136, %s138
      %p142 = scmp.eq.s32.totalorder %s27, 0
      %p143 = por %p141, %p142
      %p144 = scmp.ne.s32.totalorder %s136, %s138
      %p145 = scmp.eq.s32.totalorder %s32, 3
      %p146 = por %p144, %p145
      %p147 = scmp.ne.s32.totalorder %s138, %s139
      %p148 = scmp.eq.s32.totalorder %s32, 0
      %p149 = por %p147, %p148
      %p150 = scmp.ne.s32.totalorder %s138, %s139
      %p151 = scmp.eq.s32.totalorder %s33, 3
      %p152 = por %p150, %p151
      %p154 = scmp.ne.s32.totalorder %s139, %s153
      %p155 = scmp.eq.s32.totalorder %s33, 0
      %p156 = por %p154, %p155
      %s158 = sadd.s32 %s157, 1
      %p161 = scmp.eq.s32.totalorder %s27, 3
      %p162 = scmp.ne.s32.totalorder %s157, %s159
      %p163 = scmp.eq.s32.totalorder %s27, 0
      %p164 = por %p162, %p163
      %p165 = scmp.ne.s32.totalorder %s157, %s159
      %p166 = scmp.eq.s32.totalorder %s32, 3
      %p167 = por %p165, %p166
      %p168 = scmp.ne.s32.totalorder %s159, %s160
      %p169 = scmp.eq.s32.totalorder %s32, 0
      %p170 = por %p168, %p169
      %p171 = scmp.ne.s32.totalorder %s159, %s160
      %p172 = scmp.eq.s32.totalorder %s33, 3
      %p173 = por %p171, %p172
      %p175 = scmp.ne.s32.totalorder %s160, %s174
      %p176 = scmp.eq.s32.totalorder %s33, 0
      %p177 = por %p175, %p176
      %s179 = sadd.s32 %s178, 1
      %p182 = scmp.eq.s32.totalorder %s27, 3
      %p183 = scmp.ne.s32.totalorder %s178, %s180
      %p184 = scmp.eq.s32.totalorder %s27, 0
      %p185 = por %p183, %p184
      %p186 = scmp.ne.s32.totalorder %s178, %s180
      %p187 = scmp.eq.s32.totalorder %s32, 3
      %p188 = por %p186, %p187
      %p189 = scmp.ne.s32.totalorder %s180, %s181
      %p190 = scmp.eq.s32.totalorder %s32, 0
      %p191 = por %p189, %p190
      %p192 = scmp.ne.s32.totalorder %s180, %s181
      %p193 = scmp.eq.s32.totalorder %s33, 3
      %p194 = por %p192, %p193
      %p196 = scmp.ne.s32.totalorder %s181, %s195
      %p197 = scmp.eq.s32.totalorder %s33, 0
      %p198 = por %p196, %p197
      %s200 = sadd.s32 %s199, 1
      %p203 = scmp.eq.s32.totalorder %s27, 3
      %p204 = scmp.ne.s32.totalorder %s199, %s201
      %p205 = scmp.eq.s32.totalorder %s27, 0
      %p206 = por %p204, %p205
      %p207 = scmp.ne.s32.totalorder %s199, %s201
      %p208 = scmp.eq.s32.totalorder %s32, 3
      %p209 = por %p207, %p208
      %p210 = scmp.ne.s32.totalorder %s201, %s202
      %p211 = scmp.eq.s32.totalorder %s32, 0
      %p212 = por %p210, %p211
      %p213 = scmp.ne.s32.totalorder %s201, %s202
      %p214 = scmp.eq.s32.totalorder %s33, 3
      %p215 = por %p213, %p214
      %p217 = scmp.ne.s32.totalorder %s202, %s216
      %p218 = scmp.eq.s32.totalorder %s33, 0
      %p219 = por %p217, %p218
      %s221 = sadd.s32 %s220, 1
      %p224 = scmp.eq.s32.totalorder %s27, 3
      %p225 = scmp.ne.s32.totalorder %s220, %s222
      %p226 = scmp.eq.s32.totalorder %s27, 0
      %p227 = por %p225, %p226
      %p228 = scmp.ne.s32.totalorder %s220, %s222
      %p229 = scmp.eq.s32.totalorder %s32, 3
      %p230 = por %p228, %p229
      %p231 = scmp.ne.s32.totalorder %s222, %s223
      %p232 = scmp.eq.s32.totalorder %s32, 0
      %p233 = por %p231, %p232
      %p234 = scmp.ne.s32.totalorder %s222, %s223
      %p235 = scmp.eq.s32.totalorder %s33, 3
      %p236 = por %p234, %p235
      %p238 = scmp.ne.s32.totalorder %s223, %s237
      %p239 = scmp.eq.s32.totalorder %s33, 0
      %p240 = por %p238, %p239
      %s242 = sadd.s32 %s241, 1
      %p245 = scmp.eq.s32.totalorder %s27, 3
      %p246 = scmp.ne.s32.totalorder %s241, %s243
      %p247 = scmp.eq.s32.totalorder %s27, 0
      %p248 = por %p246, %p247
      %p249 = scmp.ne.s32.totalorder %s241, %s243
      %p250 = scmp.eq.s32.totalorder %s32, 3
      %p251 = por %p249, %p250
      %p252 = scmp.ne.s32.totalorder %s243, %s244
      %p253 = scmp.eq.s32.totalorder %s32, 0
      %p254 = por %p252, %p253
      %p255 = scmp.ne.s32.totalorder %s243, %s244
      %p256 = scmp.eq.s32.totalorder %s33, 3
      %p257 = por %p255, %p256
      %p259 = scmp.ne.s32.totalorder %s244, %s258
      %p260 = scmp.eq.s32.totalorder %s33, 0
      %p261 = por %p259, %p260
      %s262 = ssub.s32 %s34, %s46
      %s263 = ssub.s32 %s35, %s42
      %s264 = sor.u32 %s262, %s263
      %p265 = scmp.eq.s32.totalorder %s264, 0
      %s267 = sadd.s32 %s266, 1
      %s268 = scalar_select %p265, %s266, %s267
      %p271 = pneg %p265
      %p272 = scmp.eq.s32.totalorder %s27, 3
      %p273 = por %p271, %p272
      %p274 = scmp.ne.s32.totalorder %s266, %s269
      %p275 = scmp.eq.s32.totalorder %s27, 0
      %p276 = por %p274, %p275
      %p277 = scmp.ne.s32.totalorder %s266, %s269
      %p278 = scmp.eq.s32.totalorder %s32, 3
      %p279 = por %p277, %p278
      %p280 = scmp.ne.s32.totalorder %s269, %s270
      %p281 = scmp.eq.s32.totalorder %s32, 0
      %p282 = por %p280, %p281
      %p283 = scmp.ne.s32.totalorder %s269, %s270
      %p284 = scmp.eq.s32.totalorder %s33, 3
      %p285 = por %p283, %p284
      %p287 = scmp.ne.s32.totalorder %s270, %s286
      %p288 = scmp.eq.s32.totalorder %s33, 0
      %p289 = por %p287, %p288
      %p290 = scmp.le.s32.totalorder 1, %s27
      %p291 = scmp.lt.s32.totalorder %s27, 5
      %p292 = pnand %p290, %p291
      %p293 = pneg %p292
      // Predicated region
      $region9: #{tpu_custom_call.1} parent=5 // pred_check
        _
      $region10: #{tpu_custom_call.1} parent=5 // pred_check_branch
        %295 = sbr.rel (%p292) target = $region12
      $region11: #{tpu_custom_call.1} parent=5 // pred_region
        %s296 = ssub.s32 %s27, 1
        // Predicated region
        $region13: #{tpu_custom_call.1} parent=11 // pred_check
          %p297 = pneg %p86
        $region14: #{tpu_custom_call.1} parent=11 // pred_check_branch
          %299 = sbr.rel (%p297) target = $region16
        $region15: #{tpu_custom_call.1} parent=11 // pred_region
          %s301 = ssub.s32 896, 896
          %302 = vsyncadd [#allocation7], %s301
          %s303 = sshll.u32 [#allocation6], 4
          %s304 = int_to_ptr.vmem [resolvable:$true] %s303
          %309 = dma.hbm_to_vmem [thread:$0]  %s1, 896, %s304, [#allocation7], 128, 128, 8
        $region16: #{tpu_custom_call.1} parent=11 // pred_fallthru
          _
        // Predicated region
        $region17: #{tpu_custom_call.1} parent=11 // pred_check
          %p310 = pneg %p107
        $region18: #{tpu_custom_call.1} parent=11 // pred_check_branch
          %312 = sbr.rel (%p310) target = $region20
        $region19: #{tpu_custom_call.1} parent=11 // pred_region
          %s314 = ssub.s32 16, 16
          %315 = vsyncadd [#allocation7], %s314
          %s317 = sshll.u32 [#allocation8], 4
          %s318 = int_to_ptr.vmem [resolvable:$true] %s317
          %320 = dma.hbm_to_vmem [thread:$0]  %s2, 16, %s318, [#allocation7]
        $region20: #{tpu_custom_call.1} parent=11 // pred_fallthru
          _
        // Predicated region
        $region21: #{tpu_custom_call.1} parent=11 // pred_check
          %p321 = pneg %p128
        $region22: #{tpu_custom_call.1} parent=11 // pred_check_branch
          %323 = sbr.rel (%p321) target = $region24
        $region23: #{tpu_custom_call.1} parent=11 // pred_region
          %s325 = ssub.s32 16, 16
          %326 = vsyncadd [#allocation10], %s325
          %s328 = sshll.u32 [#allocation9], 4
          %s329 = int_to_ptr.vmem [resolvable:$true] %s328
          %331 = dma.hbm_to_vmem [thread:$0]  %s3, 16, %s329, [#allocation10]
        $region24: #{tpu_custom_call.1} parent=11 // pred_fallthru
          _
        // Predicated region
        $region25: #{tpu_custom_call.1} parent=11 // pred_check
          %p332 = pneg %p149
        $region26: #{tpu_custom_call.1} parent=11 // pred_check_branch
          %334 = sbr.rel (%p332) target = $region28
        $region27: #{tpu_custom_call.1} parent=11 // pred_region
          %s336 = ssub.s32 16, 16
          %337 = vsyncadd [#allocation10], %s336
          %s339 = sshll.u32 [#allocation11], 4
          %s340 = int_to_ptr.vmem [resolvable:$true] %s339
          %342 = dma.hbm_to_vmem [thread:$0]  %s4, 16, %s340, [#allocation10]
        $region28: #{tpu_custom_call.1} parent=11 // pred_fallthru
          _
        // Predicated region
        $region29: #{tpu_custom_call.1} parent=11 // pred_check
          %p343 = pneg %p170
        $region30: #{tpu_custom_call.1} parent=11 // pred_check_branch
          %345 = sbr.rel (%p343) target = $region32
        $region31: #{tpu_custom_call.1} parent=11 // pred_region
          %s347 = ssub.s32 1024, 1024
          %348 = vsyncadd [#allocation13], %s347
          %s349 = sshll.u32 [#allocation12], 4
          %s350 = int_to_ptr.vmem [resolvable:$true] %s349
          %355 = dma.hbm_to_vmem [thread:$0]  %s5, 1024, %s350, [#allocation13], 128, 128, 8
        $region32: #{tpu_custom_call.1} parent=11 // pred_fallthru
          _
        // Predicated region
        $region33: #{tpu_custom_call.1} parent=11 // pred_check
          %p356 = pneg %p191
        $region34: #{tpu_custom_call.1} parent=11 // pred_check_branch
          %358 = sbr.rel (%p356) target = $region36
        $region35: #{tpu_custom_call.1} parent=11 // pred_region
          %s360 = ssub.s32 32, 32
          %361 = vsyncadd [#allocation13], %s360
          %s363 = sshll.u32 [#allocation14], 4
          %s364 = int_to_ptr.vmem [resolvable:$true] %s363
          %366 = dma.hbm_to_vmem [thread:$0]  %s6, 32, %s364, [#allocation13]
        $region36: #{tpu_custom_call.1} parent=11 // pred_fallthru
          _
        // Predicated region
        $region37: #{tpu_custom_call.1} parent=11 // pred_check
          %p367 = pneg %p212
        $region38: #{tpu_custom_call.1} parent=11 // pred_check_branch
          %369 = sbr.rel (%p367) target = $region40
        $region39: #{tpu_custom_call.1} parent=11 // pred_region
          %s371 = ssub.s32 2048, 2048
          %372 = vsyncadd [#allocation16], %s371
          %s373 = sshll.u32 [#allocation15], 4
          %s374 = int_to_ptr.vmem [resolvable:$true] %s373
          %379 = dma.hbm_to_vmem [thread:$0]  %s7, 2048, %s374, [#allocation16], 64, 64, 4
        $region40: #{tpu_custom_call.1} parent=11 // pred_fallthru
          _
        // Predicated region
        $region41: #{tpu_custom_call.1} parent=11 // pred_check
          %p380 = pneg %p233
        $region42: #{tpu_custom_call.1} parent=11 // pred_check_branch
          %382 = sbr.rel (%p380) target = $region44
        $region43: #{tpu_custom_call.1} parent=11 // pred_region
          %s384 = ssub.s32 16, 16
          %385 = vsyncadd [#allocation16], %s384
          %s387 = sshll.u32 [#allocation17], 4
          %s388 = int_to_ptr.vmem [resolvable:$true] %s387
          %390 = dma.hbm_to_vmem [thread:$0]  %s8, 16, %s388, [#allocation16]
        $region44: #{tpu_custom_call.1} parent=11 // pred_fallthru
          _
        // Predicated region
        $region45: #{tpu_custom_call.1} parent=11 // pred_check
          %p391 = pneg %p254
        $region46: #{tpu_custom_call.1} parent=11 // pred_check_branch
          %393 = sbr.rel (%p391) target = $region48
        $region47: #{tpu_custom_call.1} parent=11 // pred_region
          %s395 = ssub.s32 16, 16
          %396 = vsyncadd [#allocation19], %s395
          %s398 = sshll.u32 [#allocation18], 4
          %s399 = int_to_ptr.vmem [resolvable:$true] %s398
          %401 = dma.hbm_to_vmem [thread:$0]  %s9, 16, %s399, [#allocation19]
        $region48: #{tpu_custom_call.1} parent=11 // pred_fallthru
          _
      $region12: #{tpu_custom_call.1} parent=5 // pred_fallthru
        _
      %p402 = scmp.lt.s32.totalorder %s27, 4
      // Predicated region
      $region49: #{tpu_custom_call.1} parent=5 // pred_check
        %p403 = pneg %p402
      $region50: #{tpu_custom_call.1} parent=5 // pred_check_branch
        %405 = sbr.rel (%p403) target = $region52
      $region51: #{tpu_custom_call.1} parent=5 // pred_region
        // Predicated region
        $region53: #{tpu_custom_call.1} parent=51 // pred_check
          %p406 = pneg %p59
        $region54: #{tpu_custom_call.1} parent=51 // pred_check_branch
          %408 = sbr.rel (%p406) target = $region56
        $region55: #{tpu_custom_call.1} parent=51 // pred_region
          %s409 = sand.u32 %s49, 1
          %s410 = scalar_lea.sflag [#allocation4], %s409
          %s411 = sand.u32 %s49, 1
          %s412 = smul.addr %s411, 256
          %s413 = scalar_lea.vmem [#allocation3], %s412
          %s415 = ssub.s32 4096, 4096
          %416 = vsyncadd %s410, %s415
          %s417 = smul.addr %s34, 32
          %s418 = smul.addr %s417, 128
          %s419 = scalar_lea.hbm %s0, %s418
          %s420 = sshll.u32 %s413, 4
          %s421 = int_to_ptr.vmem [resolvable:$true] %s420
          %426 = dma.hbm_to_vmem [thread:$0]  %s419, 4096, %s421, %s410, 128, 128, 8
        $region56: #{tpu_custom_call.1} parent=51 // pred_fallthru
          _
      $region52: #{tpu_custom_call.1} parent=5 // pred_fallthru
        _
      %p427 = scmp.le.s32.totalorder 1, %s27
      %p428 = scmp.lt.s32.totalorder %s27, 5
      %p429 = pnand %p427, %p428
      %p430 = pneg %p429
      // Predicated region
      $region57: #{tpu_custom_call.1} parent=5 // pred_check
        _
      $region58: #{tpu_custom_call.1} parent=5 // pred_check_branch
        %432 = sbr.rel (%p429) target = $region60
      $region59: #{tpu_custom_call.1} parent=5 // pred_region
        %s433 = ssub.s32 %s27, 1
        %s434 = sand.u32 %s52, 1
        %s435 = scalar_lea.sflag [#allocation4], %s434
        %s436 = sand.u32 %s52, 1
        %s437 = smul.addr %s436, 256
        %s438 = scalar_lea.vmem [#allocation3], %s437
        // Predicated region
        $region61: #{tpu_custom_call.1} parent=59 // pred_check
          %p439 = pneg %p65
        $region62: #{tpu_custom_call.1} parent=59 // pred_check_branch
          %441 = sbr.rel (%p439) target = $region64
        $region63: #{tpu_custom_call.1} parent=59 // pred_region
          %442 = dma.done %s435, 4096
        $region64: #{tpu_custom_call.1} parent=59 // pred_fallthru
          _
        // Predicated region
        $region65: #{tpu_custom_call.1} parent=59 // pred_check
          %p443 = pneg %p86
        $region66: #{tpu_custom_call.1} parent=59 // pred_check_branch
          %445 = sbr.rel (%p443) target = $region68
        $region67: #{tpu_custom_call.1} parent=59 // pred_region
          %446 = dma.done [#allocation7], 896
        $region68: #{tpu_custom_call.1} parent=59 // pred_fallthru
          _
        // Predicated region
        $region69: #{tpu_custom_call.1} parent=59 // pred_check
          %p447 = pneg %p107
        $region70: #{tpu_custom_call.1} parent=59 // pred_check_branch
          %449 = sbr.rel (%p447) target = $region72
        $region71: #{tpu_custom_call.1} parent=59 // pred_region
          %450 = dma.done [#allocation7], 16
        $region72: #{tpu_custom_call.1} parent=59 // pred_fallthru
          _
        // Predicated region
        $region73: #{tpu_custom_call.1} parent=59 // pred_check
          %p451 = pneg %p128
        $region74: #{tpu_custom_call.1} parent=59 // pred_check_branch
          %453 = sbr.rel (%p451) target = $region76
        $region75: #{tpu_custom_call.1} parent=59 // pred_region
          %454 = dma.done [#allocation10], 16
        $region76: #{tpu_custom_call.1} parent=59 // pred_fallthru
          _
        // Predicated region
        $region77: #{tpu_custom_call.1} parent=59 // pred_check
          %p455 = pneg %p149
        $region78: #{tpu_custom_call.1} parent=59 // pred_check_branch
          %457 = sbr.rel (%p455) target = $region80
        $region79: #{tpu_custom_call.1} parent=59 // pred_region
          %458 = dma.done [#allocation10], 16
        $region80: #{tpu_custom_call.1} parent=59 // pred_fallthru
          _
        // Predicated region
        $region81: #{tpu_custom_call.1} parent=59 // pred_check
          %p459 = pneg %p170
        $region82: #{tpu_custom_call.1} parent=59 // pred_check_branch
          %461 = sbr.rel (%p459) target = $region84
        $region83: #{tpu_custom_call.1} parent=59 // pred_region
          %462 = dma.done [#allocation13], 1024
        $region84: #{tpu_custom_call.1} parent=59 // pred_fallthru
          _
        // Predicated region
        $region85: #{tpu_custom_call.1} parent=59 // pred_check
          %p463 = pneg %p191
        $region86: #{tpu_custom_call.1} parent=59 // pred_check_branch
          %465 = sbr.rel (%p463) target = $region88
        $region87: #{tpu_custom_call.1} parent=59 // pred_region
          %466 = dma.done [#allocation13], 32
        $region88: #{tpu_custom_call.1} parent=59 // pred_fallthru
          _
        // Predicated region
        $region89: #{tpu_custom_call.1} parent=59 // pred_check
          %p467 = pneg %p212
        $region90: #{tpu_custom_call.1} parent=59 // pred_check_branch
          %469 = sbr.rel (%p467) target = $region92
        $region91: #{tpu_custom_call.1} parent=59 // pred_region
          %470 = dma.done [#allocation16], 2048
        $region92: #{tpu_custom_call.1} parent=59 // pred_fallthru
          _
        // Predicated region
        $region93: #{tpu_custom_call.1} parent=59 // pred_check
          %p471 = pneg %p233
        $region94: #{tpu_custom_call.1} parent=59 // pred_check_branch
          %473 = sbr.rel (%p471) target = $region96
        $region95: #{tpu_custom_call.1} parent=59 // pred_region
          %474 = dma.done [#allocation16], 16
        $region96: #{tpu_custom_call.1} parent=59 // pred_fallthru
          _
        // Predicated region
        $region97: #{tpu_custom_call.1} parent=59 // pred_check
          %p475 = pneg %p254
        $region98: #{tpu_custom_call.1} parent=59 // pred_check_branch
          %477 = sbr.rel (%p475) target = $region100
        $region99: #{tpu_custom_call.1} parent=59 // pred_region
          %478 = dma.done [#allocation19], 16
        $region100: #{tpu_custom_call.1} parent=59 // pred_fallthru
          _
        %s479 = sand.u32 %s52, 1
        %s480 = scalar_lea.sflag [#allocation4], %s479
        %s481 = sand.u32 %s52, 1
        %s482 = smul.addr %s481, 256
        %s483 = scalar_lea.vmem [#allocation3], %s482
        %p484 = pneg %p65
        %p485 = pneg %p62
        %p486 = pneg %p86
        %p487 = pneg %p83
        %p488 = pneg %p107
        %p489 = pneg %p104
        %p490 = pneg %p128
        %p491 = pneg %p125
        %p492 = pneg %p149
        %p493 = pneg %p146
        %p494 = pneg %p170
        %p495 = pneg %p167
        %p496 = pneg %p191
        %p497 = pneg %p188
        %p498 = pneg %p212
        %p499 = pneg %p209
        %p500 = pneg %p233
        %p501 = pneg %p230
        %p502 = pneg %p254
        %p503 = pneg %p251
        %p504 = pneg %p282
        %p505 = pneg %p279
        %s506 = sand.u32 %s269, 1
        %s507 = scalar_lea.sflag [#allocation5], %s506
        %s508 = sand.u32 %s269, 1
        %s509 = smul.addr %s508, 128
        %s510 = scalar_lea.vmem [#allocation20], %s509
        %s511 = smul.u32 16, %s37
        %p513 = scmp.eq.s32.totalorder %s37, 0
        // Predicated region
        $region101: #{tpu_custom_call.1} parent=59 // pred_check
          %p514 = pneg %p513
        $region102: #{tpu_custom_call.1} parent=59 // pred_check_branch
          %516 = sbr.rel (%p514) target = $region104
        $region103: #{tpu_custom_call.1} parent=59 // pred_region
          %vm517 = vcmask 523264
          %518 = vst.msk [vmem:[#allocation2] sm:$0xff] %vm517, 0.0
          %519 = vst.msk [vmem:[#allocation2 + $0x8] sm:$0xff] %vm517, 0.0
          %vm520 = vcmask 521216
          %521 = vst.msk [vmem:[#allocation2 + $0x10] sm:$0x3f] %vm520, 0.0
          %522 = vst.msk [vmem:[#allocation2 + $0x18] sm:$0xff] %vm517, 0.0
          %523 = vst.msk [vmem:[#allocation2 + $0x20] sm:$0xff] %vm517, 0.0
          %524 = vst.msk [vmem:[#allocation2 + $0x28] sm:$0x3f] %vm520, 0.0
          %525 = vst.msk [vmem:[#allocation2 + $0x30] sm:$0xff] %vm517, 0.0
          %526 = vst.msk [vmem:[#allocation2 + $0x38] sm:$0xff] %vm517, 0.0
          %527 = vst.msk [vmem:[#allocation2 + $0x40] sm:$0x3f] %vm520, 0.0
          %528 = vst.msk [vmem:[#allocation2 + $0x48] sm:$0xff] %vm517, 0.0
          %529 = vst.msk [vmem:[#allocation2 + $0x50] sm:$0xff] %vm517, 0.0
          %530 = vst.msk [vmem:[#allocation2 + $0x58] sm:$0x3f] %vm520, 0.0
          %531 = vst.msk [vmem:[#allocation2 + $0x60] sm:$0xff] %vm517, 0.0
          %532 = vst.msk [vmem:[#allocation2 + $0x68] sm:$0xff] %vm517, 0.0
          %533 = vst.msk [vmem:[#allocation2 + $0x70] sm:$0x3f] %vm520, 0.0
          %534 = vst.msk [vmem:[#allocation2 + $0x78] sm:$0xff] %vm517, 0.0
          %535 = vst.msk [vmem:[#allocation2 + $0x80] sm:$0xff] %vm517, 0.0
          %536 = vst.msk [vmem:[#allocation2 + $0x88] sm:$0x3f] %vm520, 0.0
          %537 = vst.msk [vmem:[#allocation2 + $0x90] sm:$0xff] %vm517, 0.0
          %538 = vst.msk [vmem:[#allocation2 + $0x98] sm:$0xff] %vm517, 0.0
          %539 = vst.msk [vmem:[#allocation2 + $0xa0] sm:$0x3f] %vm520, 0.0
          %540 = vst.msk [vmem:[#allocation2 + $0xa8] sm:$0xff] %vm517, 0.0
          %541 = vst.msk [vmem:[#allocation2 + $0xb0] sm:$0xff] %vm517, 0.0
          %542 = vst.msk [vmem:[#allocation2 + $0xb8] sm:$0x3f] %vm520, 0.0
          %543 = vst.msk [vmem:[#allocation2 + $0xc0] sm:$0xff] %vm517, 0.0
          %544 = vst.msk [vmem:[#allocation2 + $0xc8] sm:$0xff] %vm517, 0.0
          %545 = vst.msk [vmem:[#allocation2 + $0xd0] sm:$0x3f] %vm520, 0.0
          %546 = vst.msk [vmem:[#allocation2 + $0xd8] sm:$0xff] %vm517, 0.0
          %547 = vst.msk [vmem:[#allocation2 + $0xe0] sm:$0xff] %vm517, 0.0
          %548 = vst.msk [vmem:[#allocation2 + $0xe8] sm:$0x3f] %vm520, 0.0
          %549 = vst.msk [vmem:[#allocation2 + $0xf0] sm:$0xff] %vm517, 0.0
          %550 = vst.msk [vmem:[#allocation2 + $0xf8] sm:$0xff] %vm517, 0.0
          %551 = vst.msk [vmem:[#allocation2 + $0x100] sm:$0x3f] %vm520, 0.0
          %552 = vst.msk [vmem:[#allocation2 + $0x108] sm:$0xff] %vm517, 0.0
          %553 = vst.msk [vmem:[#allocation2 + $0x110] sm:$0xff] %vm517, 0.0
          %554 = vst.msk [vmem:[#allocation2 + $0x118] sm:$0x3f] %vm520, 0.0
          %555 = vst.msk [vmem:[#allocation2 + $0x120] sm:$0xff] %vm517, 0.0
          %556 = vst.msk [vmem:[#allocation2 + $0x128] sm:$0xff] %vm517, 0.0
          %557 = vst.msk [vmem:[#allocation2 + $0x130] sm:$0x3f] %vm520, 0.0
          %558 = vst.msk [vmem:[#allocation2 + $0x138] sm:$0xff] %vm517, 0.0
          %559 = vst.msk [vmem:[#allocation2 + $0x140] sm:$0xff] %vm517, 0.0
          %560 = vst.msk [vmem:[#allocation2 + $0x148] sm:$0x3f] %vm520, 0.0
          %561 = vst.msk [vmem:[#allocation2 + $0x150] sm:$0xff] %vm517, 0.0
          %562 = vst.msk [vmem:[#allocation2 + $0x158] sm:$0xff] %vm517, 0.0
          %563 = vst.msk [vmem:[#allocation2 + $0x160] sm:$0x3f] %vm520, 0.0
          %564 = vst.msk [vmem:[#allocation2 + $0x168] sm:$0xff] %vm517, 0.0
          %565 = vst.msk [vmem:[#allocation2 + $0x170] sm:$0xff] %vm517, 0.0
          %566 = vst.msk [vmem:[#allocation2 + $0x178] sm:$0x3f] %vm520, 0.0
          %567 = vst.msk [vmem:[#allocation2 + $0x180] sm:$0xff] %vm517, 0.0
          %568 = vst.msk [vmem:[#allocation2 + $0x188] sm:$0xff] %vm517, 0.0
          %569 = vst.msk [vmem:[#allocation2 + $0x190] sm:$0x3f] %vm520, 0.0
          %570 = vst.msk [vmem:[#allocation2 + $0x198] sm:$0xff] %vm517, 0.0
          %571 = vst.msk [vmem:[#allocation2 + $0x1a0] sm:$0xff] %vm517, 0.0
          %572 = vst.msk [vmem:[#allocation2 + $0x1a8] sm:$0x3f] %vm520, 0.0
          %573 = vst.msk [vmem:[#allocation2 + $0x1b0] sm:$0xff] %vm517, 0.0
          %574 = vst.msk [vmem:[#allocation2 + $0x1b8] sm:$0xff] %vm517, 0.0
          %575 = vst.msk [vmem:[#allocation2 + $0x1c0] sm:$0x3f] %vm520, 0.0
          %576 = vst.msk [vmem:[#allocation2 + $0x1c8] sm:$0xff] %vm517, 0.0
          %577 = vst.msk [vmem:[#allocation2 + $0x1d0] sm:$0xff] %vm517, 0.0
          %578 = vst.msk [vmem:[#allocation2 + $0x1d8] sm:$0x3f] %vm520, 0.0
          %579 = vst.msk [vmem:[#allocation2 + $0x1e0] sm:$0xff] %vm517, 0.0
          %580 = vst.msk [vmem:[#allocation2 + $0x1e8] sm:$0xff] %vm517, 0.0
          %581 = vst.msk [vmem:[#allocation2 + $0x1f0] sm:$0x3f] %vm520, 0.0
          %582 = vst.msk [vmem:[#allocation2 + $0x1f8] sm:$0xff] %vm517, 0.0
          %583 = vst.msk [vmem:[#allocation2 + $0x200] sm:$0xff] %vm517, 0.0
          %584 = vst.msk [vmem:[#allocation2 + $0x208] sm:$0x3f] %vm520, 0.0
          %v585 = vld [vmem:[%s438] sm:$0xff]
          %v586 = vld [vmem:[%s438 + $0x8] sm:$0xff]
          %v587 = vld [vmem:[%s438 + $0x10] sm:$0xff]
          %v588 = vld [vmem:[%s438 + $0x18] sm:$0xff]
          %v589 = vld [vmem:[%s438 + $0x20] sm:$0xff]
          %v590 = vld [vmem:[%s438 + $0x28] sm:$0xff]
          %v591 = vld [vmem:[%s438 + $0x30] sm:$0xff]
          %v592 = vld [vmem:[%s438 + $0x38] sm:$0xff]
          %v593 = vld [vmem:[%s438 + $0x40] sm:$0xff]
          %v594 = vld [vmem:[%s438 + $0x48] sm:$0xff]
          %v595 = vld [vmem:[%s438 + $0x50] sm:$0xff]
          %v596 = vld [vmem:[%s438 + $0x58] sm:$0xff]
          %v597 = vld [vmem:[%s438 + $0x60] sm:$0xff]
          %v598 = vld [vmem:[%s438 + $0x68] sm:$0xff]
          %v599 = vld [vmem:[%s438 + $0x70] sm:$0xff]
          %v600 = vld [vmem:[%s438 + $0x78] sm:$0xff]
          %v601 = vld [vmem:[%s438 + $0x80] sm:$0xff]
          %v602 = vld [vmem:[%s438 + $0x88] sm:$0xff]
          %v603 = vld [vmem:[%s438 + $0x90] sm:$0xff]
          %v604 = vld [vmem:[%s438 + $0x98] sm:$0xff]
          %v605 = vld [vmem:[%s438 + $0xa0] sm:$0xff]
          %v606 = vld [vmem:[%s438 + $0xa8] sm:$0xff]
          %v607 = vld [vmem:[%s438 + $0xb0] sm:$0xff]
          %v608 = vld [vmem:[%s438 + $0xb8] sm:$0xff]
          %v609 = vld [vmem:[%s438 + $0xc0] sm:$0xff]
          %v610 = vld [vmem:[%s438 + $0xc8] sm:$0xff]
          %v611 = vld [vmem:[%s438 + $0xd0] sm:$0xff]
          %v612 = vld [vmem:[%s438 + $0xd8] sm:$0xff]
          %v613 = vld [vmem:[%s438 + $0xe0] sm:$0xff]
          %v614 = vld [vmem:[%s438 + $0xe8] sm:$0xff]
          %v615 = vld [vmem:[%s438 + $0xf0] sm:$0xff]
          %v616 = vld [vmem:[%s438 + $0xf8] sm:$0xff]
          %s617 = scalar_lea.vmem [#allocation2], 72
          %618 = vst.msk [vmem:[%s617 + $0x3] sm:$0xff] %vm517, %v585
          %619 = vst.msk [vmem:[%s617 + $0xb] sm:$0xff] %vm517, %v586
          %620 = vst.msk [vmem:[%s617 + $0x1b] sm:$0xff] %vm517, %v587
          %621 = vst.msk [vmem:[%s617 + $0x23] sm:$0xff] %vm517, %v588
          %622 = vst.msk [vmem:[%s617 + $0x33] sm:$0xff] %vm517, %v589
          %623 = vst.msk [vmem:[%s617 + $0x3b] sm:$0xff] %vm517, %v590
          %624 = vst.msk [vmem:[%s617 + $0x4b] sm:$0xff] %vm517, %v591
          %625 = vst.msk [vmem:[%s617 + $0x53] sm:$0xff] %vm517, %v592
          %626 = vst.msk [vmem:[%s617 + $0x63] sm:$0xff] %vm517, %v593
          %627 = vst.msk [vmem:[%s617 + $0x6b] sm:$0xff] %vm517, %v594
          %628 = vst.msk [vmem:[%s617 + $0x7b] sm:$0xff] %vm517, %v595
          %629 = vst.msk [vmem:[%s617 + $0x83] sm:$0xff] %vm517, %v596
          %630 = vst.msk [vmem:[%s617 + $0x93] sm:$0xff] %vm517, %v597
          %631 = vst.msk [vmem:[%s617 + $0x9b] sm:$0xff] %vm517, %v598
          %632 = vst.msk [vmem:[%s617 + $0xab] sm:$0xff] %vm517, %v599
          %633 = vst.msk [vmem:[%s617 + $0xb3] sm:$0xff] %vm517, %v600
          %634 = vst.msk [vmem:[%s617 + $0xc3] sm:$0xff] %vm517, %v601
          %635 = vst.msk [vmem:[%s617 + $0xcb] sm:$0xff] %vm517, %v602
          %636 = vst.msk [vmem:[%s617 + $0xdb] sm:$0xff] %vm517, %v603
          %637 = vst.msk [vmem:[%s617 + $0xe3] sm:$0xff] %vm517, %v604
          %638 = vst.msk [vmem:[%s617 + $0xf3] sm:$0xff] %vm517, %v605
          %639 = vst.msk [vmem:[%s617 + $0xfb] sm:$0xff] %vm517, %v606
          %640 = vst.msk [vmem:[%s617 + $0x10b] sm:$0xff] %vm517, %v607
          %641 = vst.msk [vmem:[%s617 + $0x113] sm:$0xff] %vm517, %v608
          %642 = vst.msk [vmem:[%s617 + $0x123] sm:$0xff] %vm517, %v609
          %643 = vst.msk [vmem:[%s617 + $0x12b] sm:$0xff] %vm517, %v610
          %644 = vst.msk [vmem:[%s617 + $0x13b] sm:$0xff] %vm517, %v611
          %645 = vst.msk [vmem:[%s617 + $0x143] sm:$0xff] %vm517, %v612
          %646 = vst.msk [vmem:[%s617 + $0x153] sm:$0xff] %vm517, %v613
          %647 = vst.msk [vmem:[%s617 + $0x15b] sm:$0xff] %vm517, %v614
          %648 = vst.msk [vmem:[%s617 + $0x16b] sm:$0xff] %vm517, %v615
          %649 = vst.msk [vmem:[%s617 + $0x173] sm:$0xff] %vm517, %v616
        $region104: #{tpu_custom_call.1} parent=59 // pred_fallthru
          _
        %s650 = smul.u32 %s37, 8
        loop: start=0, step=1, limit=7
        $region105: #{tpu_custom_call.1} parent=59 // loop_pre_header
          _
        $region106: #{tpu_custom_call.1} parent=59 // loop_header
          %s652 = sphi 0, %s656
          %p653 = scmp.ge.s32.totalorder %s652, 7
          %v657 = vphi 0.0, %v1473
          %v658 = vphi 0.0, %v1474
          %v659 = vphi 0.0, %v1475
          %v660 = vphi 0.0, %v1476
          %v661 = vphi 0.0, %v1477
          %v662 = vphi 0.0, %v1478
          %v663 = vphi 0.0, %v1479
          %v664 = vphi 0.0, %v1480
          %v665 = vphi 0.0, %v1481
          %v666 = vphi 0.0, %v1482
          %v667 = vphi 0.0, %v1483
          %v668 = vphi 0.0, %v1484
          %v669 = vphi 0.0, %v1485
          %v670 = vphi 0.0, %v1486
          %v671 = vphi 0.0, %v1487
          %v672 = vphi 0.0, %v1488
        $region107: #{tpu_custom_call.1} parent=59 // loop_header_branch
          %655 = sbr.rel (%p653) target = $region111
        $region108: #{tpu_custom_call.1} parent=59 // loop_body
          %s673 = sadd.s32 %s650, %s652
          %s674 = smul.u32 %s673, 24
          %s675 = scalar_lea.vmem [#allocation2], %s674
          %v676 = vld [vmem:[%s675] sm:$0xff]
          %v677 = vld [vmem:[%s675 + $0x8] sm:$0xff]
          %v678 = vld [vmem:[%s675 + $0x10] sm:$0x3f]
          %v679 = vld [vmem:[%s675 + $0x18] sm:$0xff]
          %v680 = vld [vmem:[%s675 + $0x20] sm:$0xff]
          %v681 = vld [vmem:[%s675 + $0x28] sm:$0x3f]
          %v682 = vld [vmem:[%s675 + $0x30] sm:$0xff]
          %v683 = vld [vmem:[%s675 + $0x38] sm:$0xff]
          %v684 = vld [vmem:[%s675 + $0x40] sm:$0x3f]
          %v685 = vld [vmem:[%s675 + $0x48] sm:$0xff]
          %v686 = vld [vmem:[%s675 + $0x50] sm:$0xff]
          %v687 = vld [vmem:[%s675 + $0x58] sm:$0x3f]
          %v688 = vld [vmem:[%s675 + $0x60] sm:$0xff]
          %v689 = vld [vmem:[%s675 + $0x68] sm:$0xff]
          %v690 = vld [vmem:[%s675 + $0x70] sm:$0x3f]
          %v691 = vld [vmem:[%s675 + $0x78] sm:$0xff]
          %v692 = vld [vmem:[%s675 + $0x80] sm:$0xff]
          %v693 = vld [vmem:[%s675 + $0x88] sm:$0x3f]
          %v694 = vld [vmem:[%s675 + $0x90] sm:$0xff]
          %v695 = vld [vmem:[%s675 + $0x98] sm:$0xff]
          %v696 = vld [vmem:[%s675 + $0xa0] sm:$0x3f]
          %v697 = vld [vmem:[%s675 + $0xa8] sm:$0xff]
          %v698 = vld [vmem:[%s675 + $0xb0] sm:$0xff]
          %v699 = vld [vmem:[%s675 + $0xb8] sm:$0x3f]
          %s700 = smul.u32 %s652, 8
          %s701 = scalar_lea.vmem [#allocation6], %s700
          %v702 = vld [vmem:[%s701] sm:$0x7f]
          %v703 = vlaneseq
          %v704 = vshrl.u32 %v703, 7
          %v705 = vsub.s32 0, %v704
          %v706 = vrot.slane %v702, %v705
          %v707 = vmul.f32 %v676, %v706
          %v708 = vmul.f32 %v677, %v706
          %v709 = vmul.f32 %v679, %v706
          %v710 = vmul.f32 %v680, %v706
          %v711 = vmul.f32 %v682, %v706
          %v712 = vmul.f32 %v683, %v706
          %v713 = vmul.f32 %v685, %v706
          %v714 = vmul.f32 %v686, %v706
          %v715 = vmul.f32 %v688, %v706
          %v716 = vmul.f32 %v689, %v706
          %v717 = vmul.f32 %v691, %v706
          %v718 = vmul.f32 %v692, %v706
          %v719 = vmul.f32 %v694, %v706
          %v720 = vmul.f32 %v695, %v706
          %v721 = vmul.f32 %v697, %v706
          %v722 = vmul.f32 %v698, %v706
          %v723 = vadd.f32 %v657, %v707
          %v724 = vadd.f32 %v658, %v708
          %v725 = vadd.f32 %v659, %v709
          %v726 = vadd.f32 %v660, %v710
          %v727 = vadd.f32 %v661, %v711
          %v728 = vadd.f32 %v662, %v712
          %v729 = vadd.f32 %v663, %v713
          %v730 = vadd.f32 %v664, %v714
          %v731 = vadd.f32 %v665, %v715
          %v732 = vadd.f32 %v666, %v716
          %v733 = vadd.f32 %v667, %v717
          %v734 = vadd.f32 %v668, %v718
          %v735 = vadd.f32 %v669, %v719
          %v736 = vadd.f32 %v670, %v720
          %v737 = vadd.f32 %v671, %v721
          %v738 = vadd.f32 %v672, %v722
          %v739 = vlaneseq
          %v740 = vshrl.u32 %v739, 7
          %v741 = vsub.s32 1, %v740
          %v742 = vrot.slane %v702, %v741
          %v743 = vmul.f32 %v676, %v742
          %v744 = vmul.f32 %v677, %v742
          %v745 = vmul.f32 %v678, %v742
          %v746 = vmul.f32 %v679, %v742
          %v747 = vmul.f32 %v680, %v742
          %v748 = vmul.f32 %v681, %v742
          %v749 = vmul.f32 %v682, %v742
          %v750 = vmul.f32 %v683, %v742
          %v751 = vmul.f32 %v684, %v742
          %v752 = vmul.f32 %v685, %v742
          %v753 = vmul.f32 %v686, %v742
          %v754 = vmul.f32 %v687, %v742
          %v755 = vmul.f32 %v688, %v742
          %v756 = vmul.f32 %v689, %v742
          %v757 = vmul.f32 %v690, %v742
          %v758 = vmul.f32 %v691, %v742
          %v759 = vmul.f32 %v692, %v742
          %v760 = vmul.f32 %v693, %v742
          %v761 = vmul.f32 %v694, %v742
          %v762 = vmul.f32 %v695, %v742
          %v763 = vmul.f32 %v696, %v742
          %v764 = vmul.f32 %v697, %v742
          %v765 = vmul.f32 %v698, %v742
          %v766 = vmul.f32 %v699, %v742
          %vm791 = vcmask 1046528
          %v792 = vrot.slane %v743, 1
          %v793 = vrot.slane %v744, 1
          %v794 = vsel %vm791, %v792, %v793
          %v795 = vrot.slane %v745, 1
          %v796 = vsel %vm791, %v793, %v795
          %v797 = vrot.slane %v746, 1
          %v798 = vrot.slane %v747, 1
          %v799 = vsel %vm791, %v797, %v798
          %v800 = vrot.slane %v748, 1
          %v801 = vsel %vm791, %v798, %v800
          %v802 = vrot.slane %v749, 1
          %v803 = vrot.slane %v750, 1
          %v804 = vsel %vm791, %v802, %v803
          %v805 = vrot.slane %v751, 1
          %v806 = vsel %vm791, %v803, %v805
          %v807 = vrot.slane %v752, 1
          %v808 = vrot.slane %v753, 1
          %v809 = vsel %vm791, %v807, %v808
          %v810 = vrot.slane %v754, 1
          %v811 = vsel %vm791, %v808, %v810
          %v812 = vrot.slane %v755, 1
          %v813 = vrot.slane %v756, 1
          %v814 = vsel %vm791, %v812, %v813
          %v815 = vrot.slane %v757, 1
          %v816 = vsel %vm791, %v813, %v815
          %v817 = vrot.slane %v758, 1
          %v818 = vrot.slane %v759, 1
          %v819 = vsel %vm791, %v817, %v818
          %v820 = vrot.slane %v760, 1
          %v821 = vsel %vm791, %v818, %v820
          %v822 = vrot.slane %v761, 1
          %v823 = vrot.slane %v762, 1
          %v824 = vsel %vm791, %v822, %v823
          %v825 = vrot.slane %v763, 1
          %v826 = vsel %vm791, %v823, %v825
          %v827 = vrot.slane %v764, 1
          %v828 = vrot.slane %v765, 1
          %v829 = vsel %vm791, %v827, %v828
          %v830 = vrot.slane %v766, 1
          %v831 = vsel %vm791, %v828, %v830
          %v848 = vadd.f32 %v723, %v794
          %v849 = vadd.f32 %v724, %v796
          %v850 = vadd.f32 %v725, %v799
          %v851 = vadd.f32 %v726, %v801
          %v852 = vadd.f32 %v727, %v804
          %v853 = vadd.f32 %v728, %v806
          %v854 = vadd.f32 %v729, %v809
          %v855 = vadd.f32 %v730, %v811
          %v856 = vadd.f32 %v731, %v814
          %v857 = vadd.f32 %v732, %v816
          %v858 = vadd.f32 %v733, %v819
          %v859 = vadd.f32 %v734, %v821
          %v860 = vadd.f32 %v735, %v824
          %v861 = vadd.f32 %v736, %v826
          %v862 = vadd.f32 %v737, %v829
          %v863 = vadd.f32 %v738, %v831
          %v864 = vlaneseq
          %v865 = vshrl.u32 %v864, 7
          %v866 = vsub.s32 2, %v865
          %v867 = vrot.slane %v702, %v866
          %v868 = vmul.f32 %v676, %v867
          %v869 = vmul.f32 %v677, %v867
          %v870 = vmul.f32 %v678, %v867
          %v871 = vmul.f32 %v679, %v867
          %v872 = vmul.f32 %v680, %v867
          %v873 = vmul.f32 %v681, %v867
          %v874 = vmul.f32 %v682, %v867
          %v875 = vmul.f32 %v683, %v867
          %v876 = vmul.f32 %v684, %v867
          %v877 = vmul.f32 %v685, %v867
          %v878 = vmul.f32 %v686, %v867
          %v879 = vmul.f32 %v687, %v867
          %v880 = vmul.f32 %v688, %v867
          %v881 = vmul.f32 %v689, %v867
          %v882 = vmul.f32 %v690, %v867
          %v883 = vmul.f32 %v691, %v867
          %v884 = vmul.f32 %v692, %v867
          %v885 = vmul.f32 %v693, %v867
          %v886 = vmul.f32 %v694, %v867
          %v887 = vmul.f32 %v695, %v867
          %v888 = vmul.f32 %v696, %v867
          %v889 = vmul.f32 %v697, %v867
          %v890 = vmul.f32 %v698, %v867
          %v891 = vmul.f32 %v699, %v867
          %vm916 = vcmask 1045504
          %v917 = vrot.slane %v868, 2
          %v918 = vrot.slane %v869, 2
          %v919 = vsel %vm916, %v917, %v918
          %v920 = vrot.slane %v870, 2
          %v921 = vsel %vm916, %v918, %v920
          %v922 = vrot.slane %v871, 2
          %v923 = vrot.slane %v872, 2
          %v924 = vsel %vm916, %v922, %v923
          %v925 = vrot.slane %v873, 2
          %v926 = vsel %vm916, %v923, %v925
          %v927 = vrot.slane %v874, 2
          %v928 = vrot.slane %v875, 2
          %v929 = vsel %vm916, %v927, %v928
          %v930 = vrot.slane %v876, 2
          %v931 = vsel %vm916, %v928, %v930
          %v932 = vrot.slane %v877, 2
          %v933 = vrot.slane %v878, 2
          %v934 = vsel %vm916, %v932, %v933
          %v935 = vrot.slane %v879, 2
          %v936 = vsel %vm916, %v933, %v935
          %v937 = vrot.slane %v880, 2
          %v938 = vrot.slane %v881, 2
          %v939 = vsel %vm916, %v937, %v938
          %v940 = vrot.slane %v882, 2
          %v941 = vsel %vm916, %v938, %v940
          %v942 = vrot.slane %v883, 2
          %v943 = vrot.slane %v884, 2
          %v944 = vsel %vm916, %v942, %v943
          %v945 = vrot.slane %v885, 2
          %v946 = vsel %vm916, %v943, %v945
          %v947 = vrot.slane %v886, 2
          %v948 = vrot.slane %v887, 2
          %v949 = vsel %vm916, %v947, %v948
          %v950 = vrot.slane %v888, 2
          %v951 = vsel %vm916, %v948, %v950
          %v952 = vrot.slane %v889, 2
          %v953 = vrot.slane %v890, 2
          %v954 = vsel %vm916, %v952, %v953
          %v955 = vrot.slane %v891, 2
          %v956 = vsel %vm916, %v953, %v955
          %v973 = vadd.f32 %v848, %v919
          %v974 = vadd.f32 %v849, %v921
          %v975 = vadd.f32 %v850, %v924
          %v976 = vadd.f32 %v851, %v926
          %v977 = vadd.f32 %v852, %v929
          %v978 = vadd.f32 %v853, %v931
          %v979 = vadd.f32 %v854, %v934
          %v980 = vadd.f32 %v855, %v936
          %v981 = vadd.f32 %v856, %v939
          %v982 = vadd.f32 %v857, %v941
          %v983 = vadd.f32 %v858, %v944
          %v984 = vadd.f32 %v859, %v946
          %v985 = vadd.f32 %v860, %v949
          %v986 = vadd.f32 %v861, %v951
          %v987 = vadd.f32 %v862, %v954
          %v988 = vadd.f32 %v863, %v956
          %v989 = vlaneseq
          %v990 = vshrl.u32 %v989, 7
          %v991 = vsub.s32 3, %v990
          %v992 = vrot.slane %v702, %v991
          %v993 = vmul.f32 %v676, %v992
          %v994 = vmul.f32 %v677, %v992
          %v995 = vmul.f32 %v678, %v992
          %v996 = vmul.f32 %v679, %v992
          %v997 = vmul.f32 %v680, %v992
          %v998 = vmul.f32 %v681, %v992
          %v999 = vmul.f32 %v682, %v992
          %v1000 = vmul.f32 %v683, %v992
          %v1001 = vmul.f32 %v684, %v992
          %v1002 = vmul.f32 %v685, %v992
          %v1003 = vmul.f32 %v686, %v992
          %v1004 = vmul.f32 %v687, %v992
          %v1005 = vmul.f32 %v688, %v992
          %v1006 = vmul.f32 %v689, %v992
          %v1007 = vmul.f32 %v690, %v992
          %v1008 = vmul.f32 %v691, %v992
          %v1009 = vmul.f32 %v692, %v992
          %v1010 = vmul.f32 %v693, %v992
          %v1011 = vmul.f32 %v694, %v992
          %v1012 = vmul.f32 %v695, %v992
          %v1013 = vmul.f32 %v696, %v992
          %v1014 = vmul.f32 %v697, %v992
          %v1015 = vmul.f32 %v698, %v992
          %v1016 = vmul.f32 %v699, %v992
          %vm1041 = vcmask 1044480
          %v1042 = vrot.slane %v993, 3
          %v1043 = vrot.slane %v994, 3
          %v1044 = vsel %vm1041, %v1042, %v1043
          %v1045 = vrot.slane %v995, 3
          %v1046 = vsel %vm1041, %v1043, %v1045
          %v1047 = vrot.slane %v996, 3
          %v1048 = vrot.slane %v997, 3
          %v1049 = vsel %vm1041, %v1047, %v1048
          %v1050 = vrot.slane %v998, 3
          %v1051 = vsel %vm1041, %v1048, %v1050
          %v1052 = vrot.slane %v999, 3
          %v1053 = vrot.slane %v1000, 3
          %v1054 = vsel %vm1041, %v1052, %v1053
          %v1055 = vrot.slane %v1001, 3
          %v1056 = vsel %vm1041, %v1053, %v1055
          %v1057 = vrot.slane %v1002, 3
          %v1058 = vrot.slane %v1003, 3
          %v1059 = vsel %vm1041, %v1057, %v1058
          %v1060 = vrot.slane %v1004, 3
          %v1061 = vsel %vm1041, %v1058, %v1060
          %v1062 = vrot.slane %v1005, 3
          %v1063 = vrot.slane %v1006, 3
          %v1064 = vsel %vm1041, %v1062, %v1063
          %v1065 = vrot.slane %v1007, 3
          %v1066 = vsel %vm1041, %v1063, %v1065
          %v1067 = vrot.slane %v1008, 3
          %v1068 = vrot.slane %v1009, 3
          %v1069 = vsel %vm1041, %v1067, %v1068
          %v1070 = vrot.slane %v1010, 3
          %v1071 = vsel %vm1041, %v1068, %v1070
          %v1072 = vrot.slane %v1011, 3
          %v1073 = vrot.slane %v1012, 3
          %v1074 = vsel %vm1041, %v1072, %v1073
          %v1075 = vrot.slane %v1013, 3
          %v1076 = vsel %vm1041, %v1073, %v1075
          %v1077 = vrot.slane %v1014, 3
          %v1078 = vrot.slane %v1015, 3
          %v1079 = vsel %vm1041, %v1077, %v1078
          %v1080 = vrot.slane %v1016, 3
          %v1081 = vsel %vm1041, %v1078, %v1080
          %v1098 = vadd.f32 %v973, %v1044
          %v1099 = vadd.f32 %v974, %v1046
          %v1100 = vadd.f32 %v975, %v1049
          %v1101 = vadd.f32 %v976, %v1051
          %v1102 = vadd.f32 %v977, %v1054
          %v1103 = vadd.f32 %v978, %v1056
          %v1104 = vadd.f32 %v979, %v1059
          %v1105 = vadd.f32 %v980, %v1061
          %v1106 = vadd.f32 %v981, %v1064
          %v1107 = vadd.f32 %v982, %v1066
          %v1108 = vadd.f32 %v983, %v1069
          %v1109 = vadd.f32 %v984, %v1071
          %v1110 = vadd.f32 %v985, %v1074
          %v1111 = vadd.f32 %v986, %v1076
          %v1112 = vadd.f32 %v987, %v1079
          %v1113 = vadd.f32 %v988, %v1081
          %v1114 = vlaneseq
          %v1115 = vshrl.u32 %v1114, 7
          %v1116 = vsub.s32 4, %v1115
          %v1117 = vrot.slane %v702, %v1116
          %v1118 = vmul.f32 %v676, %v1117
          %v1119 = vmul.f32 %v677, %v1117
          %v1120 = vmul.f32 %v678, %v1117
          %v1121 = vmul.f32 %v679, %v1117
          %v1122 = vmul.f32 %v680, %v1117
          %v1123 = vmul.f32 %v681, %v1117
          %v1124 = vmul.f32 %v682, %v1117
          %v1125 = vmul.f32 %v683, %v1117
          %v1126 = vmul.f32 %v684, %v1117
          %v1127 = vmul.f32 %v685, %v1117
          %v1128 = vmul.f32 %v686, %v1117
          %v1129 = vmul.f32 %v687, %v1117
          %v1130 = vmul.f32 %v688, %v1117
          %v1131 = vmul.f32 %v689, %v1117
          %v1132 = vmul.f32 %v690, %v1117
          %v1133 = vmul.f32 %v691, %v1117
          %v1134 = vmul.f32 %v692, %v1117
          %v1135 = vmul.f32 %v693, %v1117
          %v1136 = vmul.f32 %v694, %v1117
          %v1137 = vmul.f32 %v695, %v1117
          %v1138 = vmul.f32 %v696, %v1117
          %v1139 = vmul.f32 %v697, %v1117
          %v1140 = vmul.f32 %v698, %v1117
          %v1141 = vmul.f32 %v699, %v1117
          %vm1166 = vcmask 1043456
          %v1167 = vrot.slane %v1118, 4
          %v1168 = vrot.slane %v1119, 4
          %v1169 = vsel %vm1166, %v1167, %v1168
          %v1170 = vrot.slane %v1120, 4
          %v1171 = vsel %vm1166, %v1168, %v1170
          %v1172 = vrot.slane %v1121, 4
          %v1173 = vrot.slane %v1122, 4
          %v1174 = vsel %vm1166, %v1172, %v1173
          %v1175 = vrot.slane %v1123, 4
          %v1176 = vsel %vm1166, %v1173, %v1175
          %v1177 = vrot.slane %v1124, 4
          %v1178 = vrot.slane %v1125, 4
          %v1179 = vsel %vm1166, %v1177, %v1178
          %v1180 = vrot.slane %v1126, 4
          %v1181 = vsel %vm1166, %v1178, %v1180
          %v1182 = vrot.slane %v1127, 4
          %v1183 = vrot.slane %v1128, 4
          %v1184 = vsel %vm1166, %v1182, %v1183
          %v1185 = vrot.slane %v1129, 4
          %v1186 = vsel %vm1166, %v1183, %v1185
          %v1187 = vrot.slane %v1130, 4
          %v1188 = vrot.slane %v1131, 4
          %v1189 = vsel %vm1166, %v1187, %v1188
          %v1190 = vrot.slane %v1132, 4
          %v1191 = vsel %vm1166, %v1188, %v1190
          %v1192 = vrot.slane %v1133, 4
          %v1193 = vrot.slane %v1134, 4
          %v1194 = vsel %vm1166, %v1192, %v1193
          %v1195 = vrot.slane %v1135, 4
          %v1196 = vsel %vm1166, %v1193, %v1195
          %v1197 = vrot.slane %v1136, 4
          %v1198 = vrot.slane %v1137, 4
          %v1199 = vsel %vm1166, %v1197, %v1198
          %v1200 = vrot.slane %v1138, 4
          %v1201 = vsel %vm1166, %v1198, %v1200
          %v1202 = vrot.slane %v1139, 4
          %v1203 = vrot.slane %v1140, 4
          %v1204 = vsel %vm1166, %v1202, %v1203
          %v1205 = vrot.slane %v1141, 4
          %v1206 = vsel %vm1166, %v1203, %v1205
          %v1223 = vadd.f32 %v1098, %v1169
          %v1224 = vadd.f32 %v1099, %v1171
          %v1225 = vadd.f32 %v1100, %v1174
          %v1226 = vadd.f32 %v1101, %v1176
          %v1227 = vadd.f32 %v1102, %v1179
          %v1228 = vadd.f32 %v1103, %v1181
          %v1229 = vadd.f32 %v1104, %v1184
          %v1230 = vadd.f32 %v1105, %v1186
          %v1231 = vadd.f32 %v1106, %v1189
          %v1232 = vadd.f32 %v1107, %v1191
          %v1233 = vadd.f32 %v1108, %v1194
          %v1234 = vadd.f32 %v1109, %v1196
          %v1235 = vadd.f32 %v1110, %v1199
          %v1236 = vadd.f32 %v1111, %v1201
          %v1237 = vadd.f32 %v1112, %v1204
          %v1238 = vadd.f32 %v1113, %v1206
          %v1239 = vlaneseq
          %v1240 = vshrl.u32 %v1239, 7
          %v1241 = vsub.s32 5, %v1240
          %v1242 = vrot.slane %v702, %v1241
          %v1243 = vmul.f32 %v676, %v1242
          %v1244 = vmul.f32 %v677, %v1242
          %v1245 = vmul.f32 %v678, %v1242
          %v1246 = vmul.f32 %v679, %v1242
          %v1247 = vmul.f32 %v680, %v1242
          %v1248 = vmul.f32 %v681, %v1242
          %v1249 = vmul.f32 %v682, %v1242
          %v1250 = vmul.f32 %v683, %v1242
          %v1251 = vmul.f32 %v684, %v1242
          %v1252 = vmul.f32 %v685, %v1242
          %v1253 = vmul.f32 %v686, %v1242
          %v1254 = vmul.f32 %v687, %v1242
          %v1255 = vmul.f32 %v688, %v1242
          %v1256 = vmul.f32 %v689, %v1242
          %v1257 = vmul.f32 %v690, %v1242
          %v1258 = vmul.f32 %v691, %v1242
          %v1259 = vmul.f32 %v692, %v1242
          %v1260 = vmul.f32 %v693, %v1242
          %v1261 = vmul.f32 %v694, %v1242
          %v1262 = vmul.f32 %v695, %v1242
          %v1263 = vmul.f32 %v696, %v1242
          %v1264 = vmul.f32 %v697, %v1242
          %v1265 = vmul.f32 %v698, %v1242
          %v1266 = vmul.f32 %v699, %v1242
          %vm1291 = vcmask 1042432
          %v1292 = vrot.slane %v1243, 5
          %v1293 = vrot.slane %v1244, 5
          %v1294 = vsel %vm1291, %v1292, %v1293
          %v1295 = vrot.slane %v1245, 5
          %v1296 = vsel %vm1291, %v1293, %v1295
          %v1297 = vrot.slane %v1246, 5
          %v1298 = vrot.slane %v1247, 5
          %v1299 = vsel %vm1291, %v1297, %v1298
          %v1300 = vrot.slane %v1248, 5
          %v1301 = vsel %vm1291, %v1298, %v1300
          %v1302 = vrot.slane %v1249, 5
          %v1303 = vrot.slane %v1250, 5
          %v1304 = vsel %vm1291, %v1302, %v1303
          %v1305 = vrot.slane %v1251, 5
          %v1306 = vsel %vm1291, %v1303, %v1305
          %v1307 = vrot.slane %v1252, 5
          %v1308 = vrot.slane %v1253, 5
          %v1309 = vsel %vm1291, %v1307, %v1308
          %v1310 = vrot.slane %v1254, 5
          %v1311 = vsel %vm1291, %v1308, %v1310
          %v1312 = vrot.slane %v1255, 5
          %v1313 = vrot.slane %v1256, 5
          %v1314 = vsel %vm1291, %v1312, %v1313
          %v1315 = vrot.slane %v1257, 5
          %v1316 = vsel %vm1291, %v1313, %v1315
          %v1317 = vrot.slane %v1258, 5
          %v1318 = vrot.slane %v1259, 5
          %v1319 = vsel %vm1291, %v1317, %v1318
          %v1320 = vrot.slane %v1260, 5
          %v1321 = vsel %vm1291, %v1318, %v1320
          %v1322 = vrot.slane %v1261, 5
          %v1323 = vrot.slane %v1262, 5
          %v1324 = vsel %vm1291, %v1322, %v1323
          %v1325 = vrot.slane %v1263, 5
          %v1326 = vsel %vm1291, %v1323, %v1325
          %v1327 = vrot.slane %v1264, 5
          %v1328 = vrot.slane %v1265, 5
          %v1329 = vsel %vm1291, %v1327, %v1328
          %v1330 = vrot.slane %v1266, 5
          %v1331 = vsel %vm1291, %v1328, %v1330
          %v1348 = vadd.f32 %v1223, %v1294
          %v1349 = vadd.f32 %v1224, %v1296
          %v1350 = vadd.f32 %v1225, %v1299
          %v1351 = vadd.f32 %v1226, %v1301
          %v1352 = vadd.f32 %v1227, %v1304
          %v1353 = vadd.f32 %v1228, %v1306
          %v1354 = vadd.f32 %v1229, %v1309
          %v1355 = vadd.f32 %v1230, %v1311
          %v1356 = vadd.f32 %v1231, %v1314
          %v1357 = vadd.f32 %v1232, %v1316
          %v1358 = vadd.f32 %v1233, %v1319
          %v1359 = vadd.f32 %v1234, %v1321
          %v1360 = vadd.f32 %v1235, %v1324
          %v1361 = vadd.f32 %v1236, %v1326
          %v1362 = vadd.f32 %v1237, %v1329
          %v1363 = vadd.f32 %v1238, %v1331
          %v1364 = vlaneseq
          %v1365 = vshrl.u32 %v1364, 7
          %v1366 = vsub.s32 6, %v1365
          %v1367 = vrot.slane %v702, %v1366
          %v1368 = vmul.f32 %v676, %v1367
          %v1369 = vmul.f32 %v677, %v1367
          %v1370 = vmul.f32 %v678, %v1367
          %v1371 = vmul.f32 %v679, %v1367
          %v1372 = vmul.f32 %v680, %v1367
          %v1373 = vmul.f32 %v681, %v1367
          %v1374 = vmul.f32 %v682, %v1367
          %v1375 = vmul.f32 %v683, %v1367
          %v1376 = vmul.f32 %v684, %v1367
          %v1377 = vmul.f32 %v685, %v1367
          %v1378 = vmul.f32 %v686, %v1367
          %v1379 = vmul.f32 %v687, %v1367
          %v1380 = vmul.f32 %v688, %v1367
          %v1381 = vmul.f32 %v689, %v1367
          %v1382 = vmul.f32 %v690, %v1367
          %v1383 = vmul.f32 %v691, %v1367
          %v1384 = vmul.f32 %v692, %v1367
          %v1385 = vmul.f32 %v693, %v1367
          %v1386 = vmul.f32 %v694, %v1367
          %v1387 = vmul.f32 %v695, %v1367
          %v1388 = vmul.f32 %v696, %v1367
          %v1389 = vmul.f32 %v697, %v1367
          %v1390 = vmul.f32 %v698, %v1367
          %v1391 = vmul.f32 %v699, %v1367
          %vm1416 = vcmask 1041408
          %v1417 = vrot.slane %v1368, 6
          %v1418 = vrot.slane %v1369, 6
          %v1419 = vsel %vm1416, %v1417, %v1418
          %v1420 = vrot.slane %v1370, 6
          %v1421 = vsel %vm1416, %v1418, %v1420
          %v1422 = vrot.slane %v1371, 6
          %v1423 = vrot.slane %v1372, 6
          %v1424 = vsel %vm1416, %v1422, %v1423
          %v1425 = vrot.slane %v1373, 6
          %v1426 = vsel %vm1416, %v1423, %v1425
          %v1427 = vrot.slane %v1374, 6
          %v1428 = vrot.slane %v1375, 6
          %v1429 = vsel %vm1416, %v1427, %v1428
          %v1430 = vrot.slane %v1376, 6
          %v1431 = vsel %vm1416, %v1428, %v1430
          %v1432 = vrot.slane %v1377, 6
          %v1433 = vrot.slane %v1378, 6
          %v1434 = vsel %vm1416, %v1432, %v1433
          %v1435 = vrot.slane %v1379, 6
          %v1436 = vsel %vm1416, %v1433, %v1435
          %v1437 = vrot.slane %v1380, 6
          %v1438 = vrot.slane %v1381, 6
          %v1439 = vsel %vm1416, %v1437, %v1438
          %v1440 = vrot.slane %v1382, 6
          %v1441 = vsel %vm1416, %v1438, %v1440
          %v1442 = vrot.slane %v1383, 6
          %v1443 = vrot.slane %v1384, 6
          %v1444 = vsel %vm1416, %v1442, %v1443
          %v1445 = vrot.slane %v1385, 6
          %v1446 = vsel %vm1416, %v1443, %v1445
          %v1447 = vrot.slane %v1386, 6
          %v1448 = vrot.slane %v1387, 6
          %v1449 = vsel %vm1416, %v1447, %v1448
          %v1450 = vrot.slane %v1388, 6
          %v1451 = vsel %vm1416, %v1448, %v1450
          %v1452 = vrot.slane %v1389, 6
          %v1453 = vrot.slane %v1390, 6
          %v1454 = vsel %vm1416, %v1452, %v1453
          %v1455 = vrot.slane %v1391, 6
          %v1456 = vsel %vm1416, %v1453, %v1455
          %v1473 = vadd.f32 %v1348, %v1419
          %v1474 = vadd.f32 %v1349, %v1421
          %v1475 = vadd.f32 %v1350, %v1424
          %v1476 = vadd.f32 %v1351, %v1426
          %v1477 = vadd.f32 %v1352, %v1429
          %v1478 = vadd.f32 %v1353, %v1431
          %v1479 = vadd.f32 %v1354, %v1434
          %v1480 = vadd.f32 %v1355, %v1436
          %v1481 = vadd.f32 %v1356, %v1439
          %v1482 = vadd.f32 %v1357, %v1441
          %v1483 = vadd.f32 %v1358, %v1444
          %v1484 = vadd.f32 %v1359, %v1446
          %v1485 = vadd.f32 %v1360, %v1449
          %v1486 = vadd.f32 %v1361, %v1451
          %v1487 = vadd.f32 %v1362, %v1454
          %v1488 = vadd.f32 %v1363, %v1456
        $region109: #{tpu_custom_call.1} parent=59 // loop_footer
          %s656 = sadd.s32 1, %s652
        $region110: #{tpu_custom_call.1} parent=59 // loop_footer_branch
          %651 = sbr.rel target = $region106
        $region111: #{tpu_custom_call.1} parent=59 // loop_exit
          _
        %v1489 = vld [vmem:[#allocation8] sm:$0x1]
        %v1491 = vlaneseq
        %v1492 = vshrl.u32 %v1491, 7
        %v1493 = vsub.s32 0, %v1492
        %v1494 = vrot.slane %v1489, %v1493
        %v1496 = vadd.f32 %v657, %v1494
        %v1497 = vadd.f32 %v658, %v1494
        %v1498 = vadd.f32 %v659, %v1494
        %v1499 = vadd.f32 %v660, %v1494
        %v1500 = vadd.f32 %v661, %v1494
        %v1501 = vadd.f32 %v662, %v1494
        %v1502 = vadd.f32 %v663, %v1494
        %v1503 = vadd.f32 %v664, %v1494
        %v1504 = vadd.f32 %v665, %v1494
        %v1505 = vadd.f32 %v666, %v1494
        %v1506 = vadd.f32 %v667, %v1494
        %v1507 = vadd.f32 %v668, %v1494
        %v1508 = vadd.f32 %v669, %v1494
        %v1509 = vadd.f32 %v670, %v1494
        %v1510 = vadd.f32 %v671, %v1494
        %v1511 = vadd.f32 %v672, %v1494
        %vm1512 = vcmask 523264
        %v1513 = vsel %vm1512, %v1496, 0.0
        %1514 = vadd.xlane.f32.xlu0 %v1513
        %v1515 = vpop.xlane.xlu0 %1514
        %v1516 = vsel %vm1512, %v1497, 0.0
        %1517 = vadd.xlane.f32.xlu0 %v1516
        %v1518 = vpop.xlane.xlu0 %1517
        %v1519 = vsel %vm1512, %v1498, 0.0
        %1520 = vadd.xlane.f32.xlu0 %v1519
        %v1521 = vpop.xlane.xlu0 %1520
        %v1522 = vsel %vm1512, %v1499, 0.0
        %1523 = vadd.xlane.f32.xlu0 %v1522
        %v1524 = vpop.xlane.xlu0 %1523
        %v1525 = vsel %vm1512, %v1500, 0.0
        %1526 = vadd.xlane.f32.xlu0 %v1525
        %v1527 = vpop.xlane.xlu0 %1526
        %v1528 = vsel %vm1512, %v1501, 0.0
        %1529 = vadd.xlane.f32.xlu0 %v1528
        %v1530 = vpop.xlane.xlu0 %1529
        %v1531 = vsel %vm1512, %v1502, 0.0
        %1532 = vadd.xlane.f32.xlu0 %v1531
        %v1533 = vpop.xlane.xlu0 %1532
        %v1534 = vsel %vm1512, %v1503, 0.0
        %1535 = vadd.xlane.f32.xlu0 %v1534
        %v1536 = vpop.xlane.xlu0 %1535
        %v1537 = vsel %vm1512, %v1504, 0.0
        %1538 = vadd.xlane.f32.xlu0 %v1537
        %v1539 = vpop.xlane.xlu0 %1538
        %v1540 = vsel %vm1512, %v1505, 0.0
        %1541 = vadd.xlane.f32.xlu0 %v1540
        %v1542 = vpop.xlane.xlu0 %1541
        %v1543 = vsel %vm1512, %v1506, 0.0
        %1544 = vadd.xlane.f32.xlu0 %v1543
        %v1545 = vpop.xlane.xlu0 %1544
        %v1546 = vsel %vm1512, %v1507, 0.0
        %1547 = vadd.xlane.f32.xlu0 %v1546
        %v1548 = vpop.xlane.xlu0 %1547
        %v1549 = vsel %vm1512, %v1508, 0.0
        %1550 = vadd.xlane.f32.xlu0 %v1549
        %v1551 = vpop.xlane.xlu0 %1550
        %v1552 = vsel %vm1512, %v1509, 0.0
        %1553 = vadd.xlane.f32.xlu0 %v1552
        %v1554 = vpop.xlane.xlu0 %1553
        %v1555 = vsel %vm1512, %v1510, 0.0
        %1556 = vadd.xlane.f32.xlu0 %v1555
        %v1557 = vpop.xlane.xlu0 %1556
        %v1558 = vsel %vm1512, %v1511, 0.0
        %1559 = vadd.xlane.f32.xlu0 %v1558
        %v1560 = vpop.xlane.xlu0 %1559
        %v1561 = vrcp.pop 64.0
        %v1562 = vmul.f32 %v1515, %v1561
        %v1563 = vmul.f32 %v1518, %v1561
        %v1564 = vmul.f32 %v1521, %v1561
        %v1565 = vmul.f32 %v1524, %v1561
        %v1566 = vmul.f32 %v1527, %v1561
        %v1567 = vmul.f32 %v1530, %v1561
        %v1568 = vmul.f32 %v1533, %v1561
        %v1569 = vmul.f32 %v1536, %v1561
        %v1570 = vmul.f32 %v1539, %v1561
        %v1571 = vmul.f32 %v1542, %v1561
        %v1572 = vmul.f32 %v1545, %v1561
        %v1573 = vmul.f32 %v1548, %v1561
        %v1574 = vmul.f32 %v1551, %v1561
        %v1575 = vmul.f32 %v1554, %v1561
        %v1576 = vmul.f32 %v1557, %v1561
        %v1577 = vmul.f32 %v1560, %v1561
        %v1578 = vsub.f32 %v1496, %v1562
        %v1579 = vsub.f32 %v1497, %v1563
        %v1580 = vsub.f32 %v1498, %v1564
        %v1581 = vsub.f32 %v1499, %v1565
        %v1582 = vsub.f32 %v1500, %v1566
        %v1583 = vsub.f32 %v1501, %v1567
        %v1584 = vsub.f32 %v1502, %v1568
        %v1585 = vsub.f32 %v1503, %v1569
        %v1586 = vsub.f32 %v1504, %v1570
        %v1587 = vsub.f32 %v1505, %v1571
        %v1588 = vsub.f32 %v1506, %v1572
        %v1589 = vsub.f32 %v1507, %v1573
        %v1590 = vsub.f32 %v1508, %v1574
        %v1591 = vsub.f32 %v1509, %v1575
        %v1592 = vsub.f32 %v1510, %v1576
        %v1593 = vsub.f32 %v1511, %v1577
        %v1594 = vmul.f32 %v1578, %v1578
        %v1595 = vmul.f32 %v1579, %v1579
        %v1596 = vmul.f32 %v1580, %v1580
        %v1597 = vmul.f32 %v1581, %v1581
        %v1598 = vmul.f32 %v1582, %v1582
        %v1599 = vmul.f32 %v1583, %v1583
        %v1600 = vmul.f32 %v1584, %v1584
        %v1601 = vmul.f32 %v1585, %v1585
        %v1602 = vmul.f32 %v1586, %v1586
        %v1603 = vmul.f32 %v1587, %v1587
        %v1604 = vmul.f32 %v1588, %v1588
        %v1605 = vmul.f32 %v1589, %v1589
        %v1606 = vmul.f32 %v1590, %v1590
        %v1607 = vmul.f32 %v1591, %v1591
        %v1608 = vmul.f32 %v1592, %v1592
        %v1609 = vmul.f32 %v1593, %v1593
        %v1610 = vsel %vm1512, %v1594, 0.0
        %1611 = vadd.xlane.f32.xlu0 %v1610
        %v1612 = vpop.xlane.xlu0 %1611
        %v1613 = vsel %vm1512, %v1595, 0.0
        %1614 = vadd.xlane.f32.xlu0 %v1613
        %v1615 = vpop.xlane.xlu0 %1614
        %v1616 = vsel %vm1512, %v1596, 0.0
        %1617 = vadd.xlane.f32.xlu0 %v1616
        %v1618 = vpop.xlane.xlu0 %1617
        %v1619 = vsel %vm1512, %v1597, 0.0
        %1620 = vadd.xlane.f32.xlu0 %v1619
        %v1621 = vpop.xlane.xlu0 %1620
        %v1622 = vsel %vm1512, %v1598, 0.0
        %1623 = vadd.xlane.f32.xlu0 %v1622
        %v1624 = vpop.xlane.xlu0 %1623
        %v1625 = vsel %vm1512, %v1599, 0.0
        %1626 = vadd.xlane.f32.xlu0 %v1625
        %v1627 = vpop.xlane.xlu0 %1626
        %v1628 = vsel %vm1512, %v1600, 0.0
        %1629 = vadd.xlane.f32.xlu0 %v1628
        %v1630 = vpop.xlane.xlu0 %1629
        %v1631 = vsel %vm1512, %v1601, 0.0
        %1632 = vadd.xlane.f32.xlu0 %v1631
        %v1633 = vpop.xlane.xlu0 %1632
        %v1634 = vsel %vm1512, %v1602, 0.0
        %1635 = vadd.xlane.f32.xlu0 %v1634
        %v1636 = vpop.xlane.xlu0 %1635
        %v1637 = vsel %vm1512, %v1603, 0.0
        %1638 = vadd.xlane.f32.xlu0 %v1637
        %v1639 = vpop.xlane.xlu0 %1638
        %v1640 = vsel %vm1512, %v1604, 0.0
        %1641 = vadd.xlane.f32.xlu0 %v1640
        %v1642 = vpop.xlane.xlu0 %1641
        %v1643 = vsel %vm1512, %v1605, 0.0
        %1644 = vadd.xlane.f32.xlu0 %v1643
        %v1645 = vpop.xlane.xlu0 %1644
        %v1646 = vsel %vm1512, %v1606, 0.0
        %1647 = vadd.xlane.f32.xlu0 %v1646
        %v1648 = vpop.xlane.xlu0 %1647
        %v1649 = vsel %vm1512, %v1607, 0.0
        %1650 = vadd.xlane.f32.xlu0 %v1649
        %v1651 = vpop.xlane.xlu0 %1650
        %v1652 = vsel %vm1512, %v1608, 0.0
        %1653 = vadd.xlane.f32.xlu0 %v1652
        %v1654 = vpop.xlane.xlu0 %1653
        %v1655 = vsel %vm1512, %v1609, 0.0
        %1656 = vadd.xlane.f32.xlu0 %v1655
        %v1657 = vpop.xlane.xlu0 %1656
        %v1658 = vmul.f32 %v1612, %v1561
        %v1659 = vmul.f32 %v1615, %v1561
        %v1660 = vmul.f32 %v1618, %v1561
        %v1661 = vmul.f32 %v1621, %v1561
        %v1662 = vmul.f32 %v1624, %v1561
        %v1663 = vmul.f32 %v1627, %v1561
        %v1664 = vmul.f32 %v1630, %v1561
        %v1665 = vmul.f32 %v1633, %v1561
        %v1666 = vmul.f32 %v1636, %v1561
        %v1667 = vmul.f32 %v1639, %v1561
        %v1668 = vmul.f32 %v1642, %v1561
        %v1669 = vmul.f32 %v1645, %v1561
        %v1670 = vmul.f32 %v1648, %v1561
        %v1671 = vmul.f32 %v1651, %v1561
        %v1672 = vmul.f32 %v1654, %v1561
        %v1673 = vmul.f32 %v1657, %v1561
        %v1674 = vadd.f32 %v1658, 1e-06
        %v1675 = vadd.f32 %v1659, 1e-06
        %v1676 = vadd.f32 %v1660, 1e-06
        %v1677 = vadd.f32 %v1661, 1e-06
        %v1678 = vadd.f32 %v1662, 1e-06
        %v1679 = vadd.f32 %v1663, 1e-06
        %v1680 = vadd.f32 %v1664, 1e-06
        %v1681 = vadd.f32 %v1665, 1e-06
        %v1682 = vadd.f32 %v1666, 1e-06
        %v1683 = vadd.f32 %v1667, 1e-06
        %v1684 = vadd.f32 %v1668, 1e-06
        %v1685 = vadd.f32 %v1669, 1e-06
        %v1686 = vadd.f32 %v1670, 1e-06
        %v1687 = vadd.f32 %v1671, 1e-06
        %v1688 = vadd.f32 %v1672, 1e-06
        %v1689 = vadd.f32 %v1673, 1e-06
        %v1690 = vrsqrt.pop %v1674
        %v1691 = vrsqrt.pop %v1675
        %v1692 = vrsqrt.pop %v1676
        %v1693 = vrsqrt.pop %v1677
        %v1694 = vrsqrt.pop %v1678
        %v1695 = vrsqrt.pop %v1679
        %v1696 = vrsqrt.pop %v1680
        %v1697 = vrsqrt.pop %v1681
        %v1698 = vrsqrt.pop %v1682
        %v1699 = vrsqrt.pop %v1683
        %v1700 = vrsqrt.pop %v1684
        %v1701 = vrsqrt.pop %v1685
        %v1702 = vrsqrt.pop %v1686
        %v1703 = vrsqrt.pop %v1687
        %v1704 = vrsqrt.pop %v1688
        %v1705 = vrsqrt.pop %v1689
        %v1706 = vmul.f32 %v1578, %v1690
        %v1707 = vmul.f32 %v1579, %v1691
        %v1708 = vmul.f32 %v1580, %v1692
        %v1709 = vmul.f32 %v1581, %v1693
        %v1710 = vmul.f32 %v1582, %v1694
        %v1711 = vmul.f32 %v1583, %v1695
        %v1712 = vmul.f32 %v1584, %v1696
        %v1713 = vmul.f32 %v1585, %v1697
        %v1714 = vmul.f32 %v1586, %v1698
        %v1715 = vmul.f32 %v1587, %v1699
        %v1716 = vmul.f32 %v1588, %v1700
        %v1717 = vmul.f32 %v1589, %v1701
        %v1718 = vmul.f32 %v1590, %v1702
        %v1719 = vmul.f32 %v1591, %v1703
        %v1720 = vmul.f32 %v1592, %v1704
        %v1721 = vmul.f32 %v1593, %v1705
        %v1722 = vld [vmem:[#allocation9] sm:$0x1]
        %v1724 = vlaneseq
        %v1725 = vshrl.u32 %v1724, 7
        %v1726 = vsub.s32 0, %v1725
        %v1727 = vrot.slane %v1722, %v1726
        %v1729 = vmul.f32 %v1706, %v1727
        %v1730 = vmul.f32 %v1707, %v1727
        %v1731 = vmul.f32 %v1708, %v1727
        %v1732 = vmul.f32 %v1709, %v1727
        %v1733 = vmul.f32 %v1710, %v1727
        %v1734 = vmul.f32 %v1711, %v1727
        %v1735 = vmul.f32 %v1712, %v1727
        %v1736 = vmul.f32 %v1713, %v1727
        %v1737 = vmul.f32 %v1714, %v1727
        %v1738 = vmul.f32 %v1715, %v1727
        %v1739 = vmul.f32 %v1716, %v1727
        %v1740 = vmul.f32 %v1717, %v1727
        %v1741 = vmul.f32 %v1718, %v1727
        %v1742 = vmul.f32 %v1719, %v1727
        %v1743 = vmul.f32 %v1720, %v1727
        %v1744 = vmul.f32 %v1721, %v1727
        %v1745 = vld [vmem:[#allocation11] sm:$0x1]
        %v1747 = vlaneseq
        %v1748 = vshrl.u32 %v1747, 7
        %v1749 = vsub.s32 0, %v1748
        %v1750 = vrot.slane %v1745, %v1749
        %v1752 = vadd.f32 %v1729, %v1750
        %v1753 = vadd.f32 %v1730, %v1750
        %v1754 = vadd.f32 %v1731, %v1750
        %v1755 = vadd.f32 %v1732, %v1750
        %v1756 = vadd.f32 %v1733, %v1750
        %v1757 = vadd.f32 %v1734, %v1750
        %v1758 = vadd.f32 %v1735, %v1750
        %v1759 = vadd.f32 %v1736, %v1750
        %v1760 = vadd.f32 %v1737, %v1750
        %v1761 = vadd.f32 %v1738, %v1750
        %v1762 = vadd.f32 %v1739, %v1750
        %v1763 = vadd.f32 %v1740, %v1750
        %v1764 = vadd.f32 %v1741, %v1750
        %v1765 = vadd.f32 %v1742, %v1750
        %v1766 = vadd.f32 %v1743, %v1750
        %v1767 = vadd.f32 %v1744, %v1750
        %v1768 = vpack.c.bf16 %v1753, %v1752
        %v1769 = vpack.c.bf16 %v1755, %v1754
        %v1770 = vpack.c.bf16 %v1757, %v1756
        %v1771 = vpack.c.bf16 %v1759, %v1758
        %v1772 = vpack.c.bf16 %v1761, %v1760
        %v1773 = vpack.c.bf16 %v1763, %v1762
        %v1774 = vpack.c.bf16 %v1765, %v1764
        %v1775 = vpack.c.bf16 %v1767, %v1766
        %v1776 = vld [vmem:[#allocation12] sm:$0xff]
        %v1777 = vld [vmem:[#allocation12 + $0x8] sm:$0xff]
        %v1778 = vld [vmem:[#allocation12 + $0x10] sm:$0xff]
        %v1779 = vld [vmem:[#allocation12 + $0x18] sm:$0xff]
        %v1780 = vld [vmem:[#allocation12 + $0x20] sm:$0xff]
        %v1781 = vld [vmem:[#allocation12 + $0x28] sm:$0xff]
        %v1782 = vld [vmem:[#allocation12 + $0x30] sm:$0xff]
        %v1783 = vld [vmem:[#allocation12 + $0x38] sm:$0xff]
        %v1784 = vld [vmem:[#allocation14] sm:$0x3]
        %v1786 = vlaneseq
        %v1787 = vshrl.u32 %v1786, 7
        %v1788 = vsub.s32 0, %v1787
        %v1789 = vrot.slane %v1784, %v1788
        %v1790 = vlaneseq
        %v1791 = vshrl.u32 %v1790, 7
        %v1792 = vsub.s32 1, %v1791
        %v1793 = vrot.slane %v1784, %v1792
        %v1804 = vunpack.c.l.b16 %v1776
        %v1805 = vunpack.c.h.b16 %v1776
        %v1806 = vunpack.c.l.b16 %v1777
        %v1807 = vunpack.c.h.b16 %v1777
        %v1808 = vunpack.c.l.b16 %v1778
        %v1809 = vunpack.c.h.b16 %v1778
        %v1810 = vunpack.c.l.b16 %v1779
        %v1811 = vunpack.c.h.b16 %v1779
        %v1812 = vunpack.c.l.b16 %v1780
        %v1813 = vunpack.c.h.b16 %v1780
        %v1814 = vunpack.c.l.b16 %v1781
        %v1815 = vunpack.c.h.b16 %v1781
        %v1816 = vunpack.c.l.b16 %v1782
        %v1817 = vunpack.c.h.b16 %v1782
        %v1818 = vunpack.c.l.b16 %v1783
        %v1819 = vunpack.c.h.b16 %v1783
        %v1820 = vpack.c.b16 %v1806, %v1804
        %v1821 = vpack.c.b16 %v1807, %v1805
        %v1822 = vpack.c.b16 %v1810, %v1808
        %v1823 = vpack.c.b16 %v1811, %v1809
        %v1824 = vpack.c.b16 %v1814, %v1812
        %v1825 = vpack.c.b16 %v1815, %v1813
        %v1826 = vpack.c.b16 %v1818, %v1816
        %v1827 = vpack.c.b16 %v1819, %v1817
        %v1837 = vsel %vm1512, %v1768, 0
        %v1840 = vsel %vm1512, %v1769, 0
        %v1843 = vsel %vm1512, %v1770, 0
        %v1846 = vsel %vm1512, %v1771, 0
        %v1849 = vsel %vm1512, %v1772, 0
        %v1852 = vsel %vm1512, %v1773, 0
        %v1855 = vsel %vm1512, %v1774, 0
        %v1858 = vsel %vm1512, %v1775, 0
        %1860 = vmatprep.subr.bf16.mxu0 %v1821
        %1861 = vmatpush1.bf16.msra.mxu0 %v1820
        %1862 = vmatprep.subr.bf16.mxu0 %v1823
        %1863 = vmatpush1.bf16.msra.mxu0 %v1822
        %1864 = vmatprep.subr.bf16.mxu0 %v1825
        %1865 = vmatpush1.bf16.msra.mxu0 %v1824
        %1866 = vmatprep.subr.bf16.mxu0 %v1827
        %1867 = vmatpush1.bf16.msra.mxu0 %v1826
        %1868 = vmatprep.subr.bf16.mxu0 0
        %1869 = vmatpush1.bf16.msra.mxu0 0
        %1870 = vmatprep.subr.bf16.mxu0 0
        %1871 = vmatpush1.bf16.msra.mxu0 0
        %1872 = vmatprep.subr.bf16.mxu0 0
        %1873 = vmatpush1.bf16.msra.mxu0 0
        %1874 = vmatprep.subr.bf16.mxu0 0
        %1875 = vmatpush1.bf16.msra.mxu0 0
        %1876 = vmatprep.subr.bf16.mxu0 0
        %1877 = vmatpush1.bf16.msra.mxu0 0
        %1878 = vmatprep.subr.bf16.mxu0 0
        %1879 = vmatpush1.bf16.msra.mxu0 0
        %1880 = vmatprep.subr.bf16.mxu0 0
        %1881 = vmatpush1.bf16.msra.mxu0 0
        %1882 = vmatprep.subr.bf16.mxu0 0
        %1883 = vmatpush1.bf16.msra.mxu0 0
        %1884 = vmatprep.subr.bf16.mxu0 0
        %1885 = vmatpush1.bf16.msra.mxu0 0
        %1886 = vmatprep.subr.bf16.mxu0 0
        %1887 = vmatpush1.bf16.msra.mxu0 0
        %1888 = vmatprep.subr.bf16.mxu0 0
        %1889 = vmatpush1.bf16.msra.mxu0 0
        %1890 = vmatprep.subr.bf16.mxu0 0
        %1891 = vmatpush1.bf16.msra.mxu0 0
        %1892 = vmatprep.mubr.bf16.mxu0 0
        %1893 = vmatmul.mubr.bf16.gmra.mrb[0].mxu0 %v1837
        %v1894 = vpop.f32.mrb[0].mxu0
        %v1895 = vadd.f32 %v1789, %v1894
        %v1896 = vpop.f32.mrb[0].mxu0
        %v1897 = vadd.f32 %v1793, %v1896
        %v1898 = vpop.f32.mrb[0].mxu0
        %v1899 = vadd.f32 %v1789, %v1898
        %v1900 = vpop.f32.mrb[0].mxu0
        %v1901 = vadd.f32 %v1793, %v1900
        %1902 = vmatprep.mubr.bf16.mxu0 0
        %1903 = vmatmul.mubr.bf16.gmra.mrb[0].mxu0 %v1840
        %v1904 = vpop.f32.mrb[0].mxu0
        %v1905 = vadd.f32 %v1789, %v1904
        %v1906 = vpop.f32.mrb[0].mxu0
        %v1907 = vadd.f32 %v1793, %v1906
        %v1908 = vpop.f32.mrb[0].mxu0
        %v1909 = vadd.f32 %v1789, %v1908
        %v1910 = vpop.f32.mrb[0].mxu0
        %v1911 = vadd.f32 %v1793, %v1910
        %1912 = vmatprep.mubr.bf16.mxu0 0
        %1913 = vmatmul.mubr.bf16.gmra.mrb[0].mxu0 %v1843
        %v1914 = vpop.f32.mrb[0].mxu0
        %v1915 = vadd.f32 %v1789, %v1914
        %v1916 = vpop.f32.mrb[0].mxu0
        %v1917 = vadd.f32 %v1793, %v1916
        %v1918 = vpop.f32.mrb[0].mxu0
        %v1919 = vadd.f32 %v1789, %v1918
        %v1920 = vpop.f32.mrb[0].mxu0
        %v1921 = vadd.f32 %v1793, %v1920
        %1922 = vmatprep.mubr.bf16.mxu0 0
        %1923 = vmatmul.mubr.bf16.gmra.mrb[0].mxu0 %v1846
        %v1924 = vpop.f32.mrb[0].mxu0
        %v1925 = vadd.f32 %v1789, %v1924
        %v1926 = vpop.f32.mrb[0].mxu0
        %v1927 = vadd.f32 %v1793, %v1926
        %v1928 = vpop.f32.mrb[0].mxu0
        %v1929 = vadd.f32 %v1789, %v1928
        %v1930 = vpop.f32.mrb[0].mxu0
        %v1931 = vadd.f32 %v1793, %v1930
        %1932 = vmatprep.mubr.bf16.mxu0 0
        %1933 = vmatmul.mubr.bf16.gmra.mrb[0].mxu0 %v1849
        %v1934 = vpop.f32.mrb[0].mxu0
        %v1935 = vadd.f32 %v1789, %v1934
        %v1936 = vpop.f32.mrb[0].mxu0
        %v1937 = vadd.f32 %v1793, %v1936
        %v1938 = vpop.f32.mrb[0].mxu0
        %v1939 = vadd.f32 %v1789, %v1938
        %v1940 = vpop.f32.mrb[0].mxu0
        %v1941 = vadd.f32 %v1793, %v1940
        %1942 = vmatprep.mubr.bf16.mxu0 0
        %1943 = vmatmul.mubr.bf16.gmra.mrb[0].mxu0 %v1852
        %v1944 = vpop.f32.mrb[0].mxu0
        %v1945 = vadd.f32 %v1789, %v1944
        %v1946 = vpop.f32.mrb[0].mxu0
        %v1947 = vadd.f32 %v1793, %v1946
        %v1948 = vpop.f32.mrb[0].mxu0
        %v1949 = vadd.f32 %v1789, %v1948
        %v1950 = vpop.f32.mrb[0].mxu0
        %v1951 = vadd.f32 %v1793, %v1950
        %1952 = vmatprep.mubr.bf16.mxu0 0
        %1953 = vmatmul.mubr.bf16.gmra.mrb[0].mxu0 %v1855
        %v1954 = vpop.f32.mrb[0].mxu0
        %v1955 = vadd.f32 %v1789, %v1954
        %v1956 = vpop.f32.mrb[0].mxu0
        %v1957 = vadd.f32 %v1793, %v1956
        %v1958 = vpop.f32.mrb[0].mxu0
        %v1959 = vadd.f32 %v1789, %v1958
        %v1960 = vpop.f32.mrb[0].mxu0
        %v1961 = vadd.f32 %v1793, %v1960
        %1962 = vmatprep.mubr.bf16.mxu0 0
        %1963 = vmatmul.mubr.bf16.gmra.mrb[0].mxu0 %v1858
        %v1964 = vpop.f32.mrb[0].mxu0
        %v1965 = vadd.f32 %v1789, %v1964
        %v1966 = vpop.f32.mrb[0].mxu0
        %v1967 = vadd.f32 %v1793, %v1966
        %v1968 = vpop.f32.mrb[0].mxu0
        %v1969 = vadd.f32 %v1789, %v1968
        %v1970 = vpop.f32.mrb[0].mxu0
        %v1971 = vadd.f32 %v1793, %v1970
        %1972 = vdwg.mxu0
        %v1973 = vmul.f32 %v1895, 0.5
        %v1974 = vmul.f32 %v1897, 0.5
        %v1975 = vmul.f32 %v1899, 0.5
        %v1976 = vmul.f32 %v1901, 0.5
        %v1977 = vmul.f32 %v1905, 0.5
        %v1978 = vmul.f32 %v1907, 0.5
        %v1979 = vmul.f32 %v1909, 0.5
        %v1980 = vmul.f32 %v1911, 0.5
        %v1981 = vmul.f32 %v1915, 0.5
        %v1982 = vmul.f32 %v1917, 0.5
        %v1983 = vmul.f32 %v1919, 0.5
        %v1984 = vmul.f32 %v1921, 0.5
        %v1985 = vmul.f32 %v1925, 0.5
        %v1986 = vmul.f32 %v1927, 0.5
        %v1987 = vmul.f32 %v1929, 0.5
        %v1988 = vmul.f32 %v1931, 0.5
        %v1989 = vmul.f32 %v1935, 0.5
        %v1990 = vmul.f32 %v1937, 0.5
        %v1991 = vmul.f32 %v1939, 0.5
        %v1992 = vmul.f32 %v1941, 0.5
        %v1993 = vmul.f32 %v1945, 0.5
        %v1994 = vmul.f32 %v1947, 0.5
        %v1995 = vmul.f32 %v1949, 0.5
        %v1996 = vmul.f32 %v1951, 0.5
        %v1997 = vmul.f32 %v1955, 0.5
        %v1998 = vmul.f32 %v1957, 0.5
        %v1999 = vmul.f32 %v1959, 0.5
        %v2000 = vmul.f32 %v1961, 0.5
        %v2001 = vmul.f32 %v1965, 0.5
        %v2002 = vmul.f32 %v1967, 0.5
        %v2003 = vmul.f32 %v1969, 0.5
        %v2004 = vmul.f32 %v1971, 0.5
        %v2005 = vmul.f32 %v1895, 0.70710677
        %v2006 = vmul.f32 %v1897, 0.70710677
        %v2007 = vmul.f32 %v1899, 0.70710677
        %v2008 = vmul.f32 %v1901, 0.70710677
        %v2009 = vmul.f32 %v1905, 0.70710677
        %v2010 = vmul.f32 %v1907, 0.70710677
        %v2011 = vmul.f32 %v1909, 0.70710677
        %v2012 = vmul.f32 %v1911, 0.70710677
        %v2013 = vmul.f32 %v1915, 0.70710677
        %v2014 = vmul.f32 %v1917, 0.70710677
        %v2015 = vmul.f32 %v1919, 0.70710677
        %v2016 = vmul.f32 %v1921, 0.70710677
        %v2017 = vmul.f32 %v1925, 0.70710677
        %v2018 = vmul.f32 %v1927, 0.70710677
        %v2019 = vmul.f32 %v1929, 0.70710677
        %v2020 = vmul.f32 %v1931, 0.70710677
        %v2021 = vmul.f32 %v1935, 0.70710677
        %v2022 = vmul.f32 %v1937, 0.70710677
        %v2023 = vmul.f32 %v1939, 0.70710677
        %v2024 = vmul.f32 %v1941, 0.70710677
        %v2025 = vmul.f32 %v1945, 0.70710677
        %v2026 = vmul.f32 %v1947, 0.70710677
        %v2027 = vmul.f32 %v1949, 0.70710677
        %v2028 = vmul.f32 %v1951, 0.70710677
        %v2029 = vmul.f32 %v1955, 0.70710677
        %v2030 = vmul.f32 %v1957, 0.70710677
        %v2031 = vmul.f32 %v1959, 0.70710677
        %v2032 = vmul.f32 %v1961, 0.70710677
        %v2033 = vmul.f32 %v1965, 0.70710677
        %v2034 = vmul.f32 %v1967, 0.70710677
        %v2035 = vmul.f32 %v1969, 0.70710677
        %v2036 = vmul.f32 %v1971, 0.70710677
        %v2037 = verf.f32.pop %v2005
        %v2038 = verf.f32.pop %v2006
        %v2039 = verf.f32.pop %v2007
        %v2040 = verf.f32.pop %v2008
        %v2041 = verf.f32.pop %v2009
        %v2042 = verf.f32.pop %v2010
        %v2043 = verf.f32.pop %v2011
        %v2044 = verf.f32.pop %v2012
        %v2045 = verf.f32.pop %v2013
        %v2046 = verf.f32.pop %v2014
        %v2047 = verf.f32.pop %v2015
        %v2048 = verf.f32.pop %v2016
        %v2049 = verf.f32.pop %v2017
        %v2050 = verf.f32.pop %v2018
        %v2051 = verf.f32.pop %v2019
        %v2052 = verf.f32.pop %v2020
        %v2053 = verf.f32.pop %v2021
        %v2054 = verf.f32.pop %v2022
        %v2055 = verf.f32.pop %v2023
        %v2056 = verf.f32.pop %v2024
        %v2057 = verf.f32.pop %v2025
        %v2058 = verf.f32.pop %v2026
        %v2059 = verf.f32.pop %v2027
        %v2060 = verf.f32.pop %v2028
        %v2061 = verf.f32.pop %v2029
        %v2062 = verf.f32.pop %v2030
        %v2063 = verf.f32.pop %v2031
        %v2064 = verf.f32.pop %v2032
        %v2065 = verf.f32.pop %v2033
        %v2066 = verf.f32.pop %v2034
        %v2067 = verf.f32.pop %v2035
        %v2068 = verf.f32.pop %v2036
        %v2069 = vadd.f32 %v2037, 1.0
        %v2070 = vadd.f32 %v2038, 1.0
        %v2071 = vadd.f32 %v2039, 1.0
        %v2072 = vadd.f32 %v2040, 1.0
        %v2073 = vadd.f32 %v2041, 1.0
        %v2074 = vadd.f32 %v2042, 1.0
        %v2075 = vadd.f32 %v2043, 1.0
        %v2076 = vadd.f32 %v2044, 1.0
        %v2077 = vadd.f32 %v2045, 1.0
        %v2078 = vadd.f32 %v2046, 1.0
        %v2079 = vadd.f32 %v2047, 1.0
        %v2080 = vadd.f32 %v2048, 1.0
        %v2081 = vadd.f32 %v2049, 1.0
        %v2082 = vadd.f32 %v2050, 1.0
        %v2083 = vadd.f32 %v2051, 1.0
        %v2084 = vadd.f32 %v2052, 1.0
        %v2085 = vadd.f32 %v2053, 1.0
        %v2086 = vadd.f32 %v2054, 1.0
        %v2087 = vadd.f32 %v2055, 1.0
        %v2088 = vadd.f32 %v2056, 1.0
        %v2089 = vadd.f32 %v2057, 1.0
        %v2090 = vadd.f32 %v2058, 1.0
        %v2091 = vadd.f32 %v2059, 1.0
        %v2092 = vadd.f32 %v2060, 1.0
        %v2093 = vadd.f32 %v2061, 1.0
        %v2094 = vadd.f32 %v2062, 1.0
        %v2095 = vadd.f32 %v2063, 1.0
        %v2096 = vadd.f32 %v2064, 1.0
        %v2097 = vadd.f32 %v2065, 1.0
        %v2098 = vadd.f32 %v2066, 1.0
        %v2099 = vadd.f32 %v2067, 1.0
        %v2100 = vadd.f32 %v2068, 1.0
        %v2101 = vmul.f32 %v1973, %v2069
        %v2102 = vmul.f32 %v1974, %v2070
        %v2103 = vmul.f32 %v1975, %v2071
        %v2104 = vmul.f32 %v1976, %v2072
        %v2105 = vmul.f32 %v1977, %v2073
        %v2106 = vmul.f32 %v1978, %v2074
        %v2107 = vmul.f32 %v1979, %v2075
        %v2108 = vmul.f32 %v1980, %v2076
        %v2109 = vmul.f32 %v1981, %v2077
        %v2110 = vmul.f32 %v1982, %v2078
        %v2111 = vmul.f32 %v1983, %v2079
        %v2112 = vmul.f32 %v1984, %v2080
        %v2113 = vmul.f32 %v1985, %v2081
        %v2114 = vmul.f32 %v1986, %v2082
        %v2115 = vmul.f32 %v1987, %v2083
        %v2116 = vmul.f32 %v1988, %v2084
        %v2117 = vmul.f32 %v1989, %v2085
        %v2118 = vmul.f32 %v1990, %v2086
        %v2119 = vmul.f32 %v1991, %v2087
        %v2120 = vmul.f32 %v1992, %v2088
        %v2121 = vmul.f32 %v1993, %v2089
        %v2122 = vmul.f32 %v1994, %v2090
        %v2123 = vmul.f32 %v1995, %v2091
        %v2124 = vmul.f32 %v1996, %v2092
        %v2125 = vmul.f32 %v1997, %v2093
        %v2126 = vmul.f32 %v1998, %v2094
        %v2127 = vmul.f32 %v1999, %v2095
        %v2128 = vmul.f32 %v2000, %v2096
        %v2129 = vmul.f32 %v2001, %v2097
        %v2130 = vmul.f32 %v2002, %v2098
        %v2131 = vmul.f32 %v2003, %v2099
        %v2132 = vmul.f32 %v2004, %v2100
        %v2133 = vpack.c.bf16 %v2103, %v2101
        %v2134 = vpack.c.bf16 %v2104, %v2102
        %v2135 = vpack.c.bf16 %v2107, %v2105
        %v2136 = vpack.c.bf16 %v2108, %v2106
        %v2137 = vpack.c.bf16 %v2111, %v2109
        %v2138 = vpack.c.bf16 %v2112, %v2110
        %v2139 = vpack.c.bf16 %v2115, %v2113
        %v2140 = vpack.c.bf16 %v2116, %v2114
        %v2141 = vpack.c.bf16 %v2119, %v2117
        %v2142 = vpack.c.bf16 %v2120, %v2118
        %v2143 = vpack.c.bf16 %v2123, %v2121
        %v2144 = vpack.c.bf16 %v2124, %v2122
        %v2145 = vpack.c.bf16 %v2127, %v2125
        %v2146 = vpack.c.bf16 %v2128, %v2126
        %v2147 = vpack.c.bf16 %v2131, %v2129
        %v2148 = vpack.c.bf16 %v2132, %v2130
        %v2149 = vld [vmem:[#allocation15] sm:$0xf]
        %v2150 = vld [vmem:[#allocation15 + $0x4] sm:$0xf]
        %v2151 = vld [vmem:[#allocation15 + $0x8] sm:$0xf]
        %v2152 = vld [vmem:[#allocation15 + $0xc] sm:$0xf]
        %v2153 = vld [vmem:[#allocation15 + $0x10] sm:$0xf]
        %v2154 = vld [vmem:[#allocation15 + $0x14] sm:$0xf]
        %v2155 = vld [vmem:[#allocation15 + $0x18] sm:$0xf]
        %v2156 = vld [vmem:[#allocation15 + $0x1c] sm:$0xf]
        %v2157 = vld [vmem:[#allocation15 + $0x20] sm:$0xf]
        %v2158 = vld [vmem:[#allocation15 + $0x24] sm:$0xf]
        %v2159 = vld [vmem:[#allocation15 + $0x28] sm:$0xf]
        %v2160 = vld [vmem:[#allocation15 + $0x2c] sm:$0xf]
        %v2161 = vld [vmem:[#allocation15 + $0x30] sm:$0xf]
        %v2162 = vld [vmem:[#allocation15 + $0x34] sm:$0xf]
        %v2163 = vld [vmem:[#allocation15 + $0x38] sm:$0xf]
        %v2164 = vld [vmem:[#allocation15 + $0x3c] sm:$0xf]
        %v2165 = vld [vmem:[#allocation15 + $0x40] sm:$0xf]
        %v2166 = vld [vmem:[#allocation15 + $0x44] sm:$0xf]
        %v2167 = vld [vmem:[#allocation15 + $0x48] sm:$0xf]
        %v2168 = vld [vmem:[#allocation15 + $0x4c] sm:$0xf]
        %v2169 = vld [vmem:[#allocation15 + $0x50] sm:$0xf]
        %v2170 = vld [vmem:[#allocation15 + $0x54] sm:$0xf]
        %v2171 = vld [vmem:[#allocation15 + $0x58] sm:$0xf]
        %v2172 = vld [vmem:[#allocation15 + $0x5c] sm:$0xf]
        %v2173 = vld [vmem:[#allocation15 + $0x60] sm:$0xf]
        %v2174 = vld [vmem:[#allocation15 + $0x64] sm:$0xf]
        %v2175 = vld [vmem:[#allocation15 + $0x68] sm:$0xf]
        %v2176 = vld [vmem:[#allocation15 + $0x6c] sm:$0xf]
        %v2177 = vld [vmem:[#allocation15 + $0x70] sm:$0xf]
        %v2178 = vld [vmem:[#allocation15 + $0x74] sm:$0xf]
        %v2179 = vld [vmem:[#allocation15 + $0x78] sm:$0xf]
        %v2180 = vld [vmem:[#allocation15 + $0x7c] sm:$0xf]
        %v2181 = vld [vmem:[#allocation17] sm:$0x1]
        %v2183 = vlaneseq
        %v2184 = vshrl.u32 %v2183, 7
        %v2185 = vsub.s32 0, %v2184
        %v2186 = vrot.slane %v2181, %v2185
        %v2220 = vunpack.c.l.b16 %v2149
        %v2221 = vunpack.c.l.b16 %v2150
        %v2222 = vunpack.c.l.b16 %v2151
        %v2223 = vunpack.c.l.b16 %v2152
        %v2224 = vunpack.c.l.b16 %v2153
        %v2225 = vunpack.c.l.b16 %v2154
        %v2226 = vunpack.c.l.b16 %v2155
        %v2227 = vunpack.c.l.b16 %v2156
        %v2228 = vunpack.c.l.b16 %v2157
        %v2229 = vunpack.c.l.b16 %v2158
        %v2230 = vunpack.c.l.b16 %v2159
        %v2231 = vunpack.c.l.b16 %v2160
        %v2232 = vunpack.c.l.b16 %v2161
        %v2233 = vunpack.c.l.b16 %v2162
        %v2234 = vunpack.c.l.b16 %v2163
        %v2235 = vunpack.c.l.b16 %v2164
        %v2236 = vunpack.c.l.b16 %v2165
        %v2237 = vunpack.c.l.b16 %v2166
        %v2238 = vunpack.c.l.b16 %v2167
        %v2239 = vunpack.c.l.b16 %v2168
        %v2240 = vunpack.c.l.b16 %v2169
        %v2241 = vunpack.c.l.b16 %v2170
        %v2242 = vunpack.c.l.b16 %v2171
        %v2243 = vunpack.c.l.b16 %v2172
        %v2244 = vunpack.c.l.b16 %v2173
        %v2245 = vunpack.c.l.b16 %v2174
        %v2246 = vunpack.c.l.b16 %v2175
        %v2247 = vunpack.c.l.b16 %v2176
        %v2248 = vunpack.c.l.b16 %v2177
        %v2249 = vunpack.c.l.b16 %v2178
        %v2250 = vunpack.c.l.b16 %v2179
        %v2251 = vunpack.c.l.b16 %v2180
        %v2252 = vpack.c.b16 %v2221, %v2220
        %v2253 = vpack.c.b16 %v2223, %v2222
        %v2254 = vpack.c.b16 %v2225, %v2224
        %v2255 = vpack.c.b16 %v2227, %v2226
        %v2256 = vpack.c.b16 %v2229, %v2228
        %v2257 = vpack.c.b16 %v2231, %v2230
        %v2258 = vpack.c.b16 %v2233, %v2232
        %v2259 = vpack.c.b16 %v2235, %v2234
        %v2260 = vpack.c.b16 %v2237, %v2236
        %v2261 = vpack.c.b16 %v2239, %v2238
        %v2262 = vpack.c.b16 %v2241, %v2240
        %v2263 = vpack.c.b16 %v2243, %v2242
        %v2264 = vpack.c.b16 %v2245, %v2244
        %v2265 = vpack.c.b16 %v2247, %v2246
        %v2266 = vpack.c.b16 %v2249, %v2248
        %v2267 = vpack.c.b16 %v2251, %v2250
        %2284 = vmatprep.subr.bf16.mxu0 0
        %2285 = vmatpush1.bf16.msra.mxu0 %v2252
        %2286 = vmatprep.subr.bf16.mxu0 0
        %2287 = vmatpush1.bf16.msra.mxu0 %v2253
        %2288 = vmatprep.subr.bf16.mxu0 0
        %2289 = vmatpush1.bf16.msra.mxu0 %v2254
        %2290 = vmatprep.subr.bf16.mxu0 0
        %2291 = vmatpush1.bf16.msra.mxu0 %v2255
        %2292 = vmatprep.subr.bf16.mxu0 0
        %2293 = vmatpush1.bf16.msra.mxu0 %v2256
        %2294 = vmatprep.subr.bf16.mxu0 0
        %2295 = vmatpush1.bf16.msra.mxu0 %v2257
        %2296 = vmatprep.subr.bf16.mxu0 0
        %2297 = vmatpush1.bf16.msra.mxu0 %v2258
        %2298 = vmatprep.subr.bf16.mxu0 0
        %2299 = vmatpush1.bf16.msra.mxu0 %v2259
        %2300 = vmatprep.subr.bf16.mxu0 0
        %2301 = vmatpush1.bf16.msra.mxu0 %v2260
        %2302 = vmatprep.subr.bf16.mxu0 0
        %2303 = vmatpush1.bf16.msra.mxu0 %v2261
        %2304 = vmatprep.subr.bf16.mxu0 0
        %2305 = vmatpush1.bf16.msra.mxu0 %v2262
        %2306 = vmatprep.subr.bf16.mxu0 0
        %2307 = vmatpush1.bf16.msra.mxu0 %v2263
        %2308 = vmatprep.subr.bf16.mxu0 0
        %2309 = vmatpush1.bf16.msra.mxu0 %v2264
        %2310 = vmatprep.subr.bf16.mxu0 0
        %2311 = vmatpush1.bf16.msra.mxu0 %v2265
        %2312 = vmatprep.subr.bf16.mxu0 0
        %2313 = vmatpush1.bf16.msra.mxu0 %v2266
        %2314 = vmatprep.subr.bf16.mxu0 0
        %2315 = vmatpush1.bf16.msra.mxu0 %v2267
        %2316 = vmatprep.mubr.bf16.mxu0 %v2134
        %2317 = vmatmul.mubr.bf16.gmra.mrb[0].mxu0 %v2133
        %v2318 = vpop.f32.mrb[0].mxu0
        %v2319 = vadd.f32 %v2186, %v2318
        %v2320 = vpop.f32.mrb[0].mxu0
        %v2321 = vpop.f32.mrb[0].mxu0
        %v2322 = vadd.f32 %v2186, %v2321
        %v2323 = vpop.f32.mrb[0].mxu0
        %2324 = vmatprep.mubr.bf16.mxu0 %v2136
        %2325 = vmatmul.mubr.bf16.gmra.mrb[0].mxu0 %v2135
        %v2326 = vpop.f32.mrb[0].mxu0
        %v2327 = vadd.f32 %v2186, %v2326
        %v2328 = vpop.f32.mrb[0].mxu0
        %v2329 = vpop.f32.mrb[0].mxu0
        %v2330 = vadd.f32 %v2186, %v2329
        %v2331 = vpop.f32.mrb[0].mxu0
        %2332 = vmatprep.mubr.bf16.mxu0 %v2138
        %2333 = vmatmul.mubr.bf16.gmra.mrb[0].mxu0 %v2137
        %v2334 = vpop.f32.mrb[0].mxu0
        %v2335 = vadd.f32 %v2186, %v2334
        %v2336 = vpop.f32.mrb[0].mxu0
        %v2337 = vpop.f32.mrb[0].mxu0
        %v2338 = vadd.f32 %v2186, %v2337
        %v2339 = vpop.f32.mrb[0].mxu0
        %2340 = vmatprep.mubr.bf16.mxu0 %v2140
        %2341 = vmatmul.mubr.bf16.gmra.mrb[0].mxu0 %v2139
        %v2342 = vpop.f32.mrb[0].mxu0
        %v2343 = vadd.f32 %v2186, %v2342
        %v2344 = vpop.f32.mrb[0].mxu0
        %v2345 = vpop.f32.mrb[0].mxu0
        %v2346 = vadd.f32 %v2186, %v2345
        %v2347 = vpop.f32.mrb[0].mxu0
        %2348 = vmatprep.mubr.bf16.mxu0 %v2142
        %2349 = vmatmul.mubr.bf16.gmra.mrb[0].mxu0 %v2141
        %v2350 = vpop.f32.mrb[0].mxu0
        %v2351 = vadd.f32 %v2186, %v2350
        %v2352 = vpop.f32.mrb[0].mxu0
        %v2353 = vpop.f32.mrb[0].mxu0
        %v2354 = vadd.f32 %v2186, %v2353
        %v2355 = vpop.f32.mrb[0].mxu0
        %2356 = vmatprep.mubr.bf16.mxu0 %v2144
        %2357 = vmatmul.mubr.bf16.gmra.mrb[0].mxu0 %v2143
        %v2358 = vpop.f32.mrb[0].mxu0
        %v2359 = vadd.f32 %v2186, %v2358
        %v2360 = vpop.f32.mrb[0].mxu0
        %v2361 = vpop.f32.mrb[0].mxu0
        %v2362 = vadd.f32 %v2186, %v2361
        %v2363 = vpop.f32.mrb[0].mxu0
        %2364 = vmatprep.mubr.bf16.mxu0 %v2146
        %2365 = vmatmul.mubr.bf16.gmra.mrb[0].mxu0 %v2145
        %v2366 = vpop.f32.mrb[0].mxu0
        %v2367 = vadd.f32 %v2186, %v2366
        %v2368 = vpop.f32.mrb[0].mxu0
        %v2369 = vpop.f32.mrb[0].mxu0
        %v2370 = vadd.f32 %v2186, %v2369
        %v2371 = vpop.f32.mrb[0].mxu0
        %2372 = vmatprep.mubr.bf16.mxu0 %v2148
        %2373 = vmatmul.mubr.bf16.gmra.mrb[0].mxu0 %v2147
        %v2374 = vpop.f32.mrb[0].mxu0
        %v2375 = vadd.f32 %v2186, %v2374
        %v2376 = vpop.f32.mrb[0].mxu0
        %v2377 = vpop.f32.mrb[0].mxu0
        %v2378 = vadd.f32 %v2186, %v2377
        %v2379 = vpop.f32.mrb[0].mxu0
        %2380 = vdwg.mxu0
        %v2381 = vld [vmem:[#allocation18] sm:$0x1]
        %v2383 = vlaneseq
        %v2384 = vshrl.u32 %v2383, 7
        %v2385 = vsub.s32 0, %v2384
        %v2386 = vrot.slane %v2381, %v2385
        %v2388 = vmul.f32 %v2319, %v2386
        %v2389 = vmul.f32 %v2322, %v2386
        %v2390 = vmul.f32 %v2327, %v2386
        %v2391 = vmul.f32 %v2330, %v2386
        %v2392 = vmul.f32 %v2335, %v2386
        %v2393 = vmul.f32 %v2338, %v2386
        %v2394 = vmul.f32 %v2343, %v2386
        %v2395 = vmul.f32 %v2346, %v2386
        %v2396 = vmul.f32 %v2351, %v2386
        %v2397 = vmul.f32 %v2354, %v2386
        %v2398 = vmul.f32 %v2359, %v2386
        %v2399 = vmul.f32 %v2362, %v2386
        %v2400 = vmul.f32 %v2367, %v2386
        %v2401 = vmul.f32 %v2370, %v2386
        %v2402 = vmul.f32 %v2375, %v2386
        %v2403 = vmul.f32 %v2378, %v2386
        %s2404 = sadd.s32 %s650, 3
        %s2405 = smul.u32 %s2404, 24
        %s2406 = scalar_lea.vmem [#allocation2], %s2405
        %v2407 = vld [vmem:[%s2406 + $0x3] sm:$0xff]
        %v2408 = vld [vmem:[%s2406 + $0xb] sm:$0xff]
        %v2409 = vld [vmem:[%s2406 + $0x1b] sm:$0xff]
        %v2410 = vld [vmem:[%s2406 + $0x23] sm:$0xff]
        %v2411 = vld [vmem:[%s2406 + $0x33] sm:$0xff]
        %v2412 = vld [vmem:[%s2406 + $0x3b] sm:$0xff]
        %v2413 = vld [vmem:[%s2406 + $0x4b] sm:$0xff]
        %v2414 = vld [vmem:[%s2406 + $0x53] sm:$0xff]
        %v2415 = vld [vmem:[%s2406 + $0x63] sm:$0xff]
        %v2416 = vld [vmem:[%s2406 + $0x6b] sm:$0xff]
        %v2417 = vld [vmem:[%s2406 + $0x7b] sm:$0xff]
        %v2418 = vld [vmem:[%s2406 + $0x83] sm:$0xff]
        %v2419 = vld [vmem:[%s2406 + $0x93] sm:$0xff]
        %v2420 = vld [vmem:[%s2406 + $0x9b] sm:$0xff]
        %v2421 = vld [vmem:[%s2406 + $0xab] sm:$0xff]
        %v2422 = vld [vmem:[%s2406 + $0xb3] sm:$0xff]
        %v2423 = vadd.f32 %v2407, %v2388
        %v2424 = vadd.f32 %v2408, %v2389
        %v2425 = vadd.f32 %v2409, %v2390
        %v2426 = vadd.f32 %v2410, %v2391
        %v2427 = vadd.f32 %v2411, %v2392
        %v2428 = vadd.f32 %v2412, %v2393
        %v2429 = vadd.f32 %v2413, %v2394
        %v2430 = vadd.f32 %v2414, %v2395
        %v2431 = vadd.f32 %v2415, %v2396
        %v2432 = vadd.f32 %v2416, %v2397
        %v2433 = vadd.f32 %v2417, %v2398
        %v2434 = vadd.f32 %v2418, %v2399
        %v2435 = vadd.f32 %v2419, %v2400
        %v2436 = vadd.f32 %v2420, %v2401
        %v2437 = vadd.f32 %v2421, %v2402
        %v2438 = vadd.f32 %v2422, %v2403
        %2439 = vst.msk [vmem:[%s510] sm:$0xff] %vm1512, %v2423
        %2440 = vst.msk [vmem:[%s510 + $0x8] sm:$0xff] %vm1512, %v2424
        %2441 = vst.msk [vmem:[%s510 + $0x10] sm:$0xff] %vm1512, %v2425
        %2442 = vst.msk [vmem:[%s510 + $0x18] sm:$0xff] %vm1512, %v2426
        %2443 = vst.msk [vmem:[%s510 + $0x20] sm:$0xff] %vm1512, %v2427
        %2444 = vst.msk [vmem:[%s510 + $0x28] sm:$0xff] %vm1512, %v2428
        %2445 = vst.msk [vmem:[%s510 + $0x30] sm:$0xff] %vm1512, %v2429
        %2446 = vst.msk [vmem:[%s510 + $0x38] sm:$0xff] %vm1512, %v2430
        %2447 = vst.msk [vmem:[%s510 + $0x40] sm:$0xff] %vm1512, %v2431
        %2448 = vst.msk [vmem:[%s510 + $0x48] sm:$0xff] %vm1512, %v2432
        %2449 = vst.msk [vmem:[%s510 + $0x50] sm:$0xff] %vm1512, %v2433
        %2450 = vst.msk [vmem:[%s510 + $0x58] sm:$0xff] %vm1512, %v2434
        %2451 = vst.msk [vmem:[%s510 + $0x60] sm:$0xff] %vm1512, %v2435
        %2452 = vst.msk [vmem:[%s510 + $0x68] sm:$0xff] %vm1512, %v2436
        %2453 = vst.msk [vmem:[%s510 + $0x70] sm:$0xff] %vm1512, %v2437
        %2454 = vst.msk [vmem:[%s510 + $0x78] sm:$0xff] %vm1512, %v2438
        %s2455 = sand.u32 %s269, 1
        %s2456 = scalar_lea.sflag [#allocation5], %s2455
        %s2457 = sand.u32 %s269, 1
        %s2458 = smul.addr %s2457, 128
        %s2459 = scalar_lea.vmem [#allocation20], %s2458
        // Predicated region
        $region112: #{tpu_custom_call.1} parent=59 // pred_check
          %p2460 = pneg %p279
        $region113: #{tpu_custom_call.1} parent=59 // pred_check_branch
          %2462 = sbr.rel (%p2460) target = $region115
        $region114: #{tpu_custom_call.1} parent=59 // pred_region
          %s2463 = smul.u32 16, %s37
          %s2465 = ssub.s32 2048, 2048
          %2466 = vsyncadd %s2456, %s2465
          %s2467 = smul.addr %s36, 32
          %s2468 = sadd.s32 %s2463, %s2467
          %s2469 = smul.addr %s2468, 128
          %s2470 = scalar_lea.hbm %s10, %s2469
          %s2471 = sshll.u32 %s2459, 4
          %s2472 = int_to_ptr.vmem [resolvable:$true] %s2471
          %2477 = dma.vmem_to_hbm [thread:$0]  %s2472, 2048, %s2470, %s2456, 128, 128, 8
        $region115: #{tpu_custom_call.1} parent=59 // pred_fallthru
          _
      $region60: #{tpu_custom_call.1} parent=5 // pred_fallthru
        _
      %p2478 = scmp.le.s32.totalorder 2, %s27
      // Predicated region
      $region116: #{tpu_custom_call.1} parent=5 // pred_check
        %p2479 = pneg %p2478
      $region117: #{tpu_custom_call.1} parent=5 // pred_check_branch
        %2481 = sbr.rel (%p2479) target = $region119
      $region118: #{tpu_custom_call.1} parent=5 // pred_region
        %s2482 = ssub.s32 %s27, 2
        // Predicated region
        $region120: #{tpu_custom_call.1} parent=118 // pred_check
          %p2483 = pneg %p285
        $region121: #{tpu_custom_call.1} parent=118 // pred_check_branch
          %2485 = sbr.rel (%p2483) target = $region123
        $region122: #{tpu_custom_call.1} parent=118 // pred_region
          %s2486 = sand.u32 %s270, 1
          %s2487 = scalar_lea.sflag [#allocation5], %s2486
          %s2488 = sand.u32 %s270, 1
          %s2489 = smul.addr %s2488, 128
          %s2490 = scalar_lea.vmem [#allocation20], %s2489
          %2491 = dma.done %s2487, 2048
        $region123: #{tpu_custom_call.1} parent=118 // pred_fallthru
          _
      $region119: #{tpu_custom_call.1} parent=5 // pred_fallthru
        _
    $region6: #{tpu_custom_call.1} parent=1 // loop_footer
      %s31 = sadd.s32 1, %s27
    $region7: #{tpu_custom_call.1} parent=1 // loop_footer_branch
      %26 = sbr.rel target = $region3
    $region8: #{tpu_custom_call.1} parent=1 // loop_exit
      _
    %2492 = vsyncpa [#allocation4], 1
    %s2493 = scalar_lea.sflag [#allocation4], 1
    %2494 = vsyncpa %s2493, 1
    %2495 = vsyncpa [#allocation7], 1
    %2496 = vsyncpa [#allocation10], 1
    %2497 = vsyncpa [#allocation13], 1
    %2498 = vsyncpa [#allocation16], 1
    %2499 = vsyncpa [#allocation19], 1
    %2500 = vsyncpa [#allocation5], 1
    %s2501 = scalar_lea.sflag [#allocation5], 1
    %2502 = vsyncpa %s2501, 1

</llo_original>
